<compile_context>
chip_gen: v7x
topology: tpu7x:2x2x1
jax: 0.10.0
libtpu: 0.0.40
codegen_flags: <defaults>
</compile_context>

<pallas_src>
import functools
import math

import jax
import jax.numpy as jnp
from jax.experimental import pallas as pl
from jax.experimental.pallas import tpu as pltpu

MXU_DTYPE = jnp.bfloat16  # bf16 MXU operands on v5e/v6e/v7x; f32 accumulation kept


# --------------------------------------------------------------------------
# In-kernel helpers
# --------------------------------------------------------------------------
def _layernorm(x, g, b, eps=1e-5):
    mean = jnp.mean(x, axis=-1, keepdims=True)
    var = jnp.mean(jnp.square(x - mean), axis=-1, keepdims=True)
    return (x - mean) * jax.lax.rsqrt(var + eps) * g + b


def _mxu_dot(a, b):
    return jnp.dot(a.astype(MXU_DTYPE), b.astype(MXU_DTYPE),
                   preferred_element_type=jnp.float32)


# --------------------------------------------------------------------------
# Fused decoder-block kernel (LN1 + QKV + attention + proj + LN2 + MLP)
# Operates on a flattened (batch_tile * S, E) row slab.
# --------------------------------------------------------------------------
def _decoder_block_kernel(x_ref, ln1g_ref, ln1b_ref, wqkv_ref, bqkv_ref,
                          wproj_ref, bproj_ref, ln2g_ref, ln2b_ref,
                          *rest, n_heads, n_mlp, seq_len, batch_tile, scale):
    mlp_refs = rest[:2 * n_mlp]
    o_ref = rest[2 * n_mlp]
    attn_buf = rest[2 * n_mlp + 1]            # VMEM scratch (Bt*S, E) f32

    S = seq_len
    Bt = batch_tile
    E = x_ref.shape[1]
    H = n_heads
    P = E // H

    x = x_ref[...]                             # (Bt*S, E) f32

    # ---- pre-LayerNorm (DecoderBlock.layer_norm) ----
    xn = _layernorm(x, ln1g_ref[...], ln1b_ref[...])

    # ---- fused QKV projection: one (E, 3E) matmul over all rows ----
    qkv = _mxu_dot(xn, wqkv_ref[...]) + bqkv_ref[...]       # (Bt*S, 3E) f32

    # ---- causal additive mask built in-kernel (no DMA'd mask) ----
    row = jax.lax.broadcasted_iota(jnp.int32, (S, S), 0)
    col = jax.lax.broadcasted_iota(jnp.int32, (S, S), 1)
    neg_mask = jnp.where(col > row, jnp.float32(-1e30), jnp.float32(0.0))

    # ---- multi-head attention: per-head outputs go into a lane-dense
    #      (Bt*S, E) scratch slab so the output projection is a single K=E dot ----
    for b in range(Bt):
        r0 = b * S
        for h in range(H):
            qh = qkv[r0:r0 + S, h * P:(h + 1) * P]                      # (S, P)
            kh = qkv[r0:r0 + S, E + h * P:E + (h + 1) * P]              # (S, P)
            vh = qkv[r0:r0 + S, 2 * E + h * P:2 * E + (h + 1) * P]      # (S, P)

            att = jax.lax.dot_general(
                qh.astype(MXU_DTYPE), kh.astype(MXU_DTYPE),
                (((1,), (1,)), ((), ())),
                preferred_element_type=jnp.float32) * scale             # (S, S)
            att = att + neg_mask
            att = att - jnp.max(att, axis=-1, keepdims=True)
            p = jnp.exp(att)
            p = p * pl.reciprocal(jnp.sum(p, axis=-1, keepdims=True), approx=True)

            attn_buf[r0:r0 + S, h * P:(h + 1) * P] = _mxu_dot(p, vh)    # (S, P)

    # single lane-dense projection: (Bt*S, E) @ (E, E)
    attn = _mxu_dot(attn_buf[...], wproj_ref[...]) + bproj_ref[...]

    # residual on the LN1 output (torch: x = LN(x); x = x + attn(x))
    x1 = xn + attn

    # ---- LN2 + MLP (Linear + ReLU per layer), residual ----
    h_act = _layernorm(x1, ln2g_ref[...], ln2b_ref[...])
    for i in range(n_mlp):
        w_ref = mlp_refs[2 * i]
        b_ref = mlp_refs[2 * i + 1]
        h_act = jnp.maximum(_mxu_dot(h_act, w_ref[...]) + b_ref[...], 0.0)

    o_ref[...] = (x1 + h_act).astype(o_ref.dtype)


def _pick_batch_tile(N, S):
    # Largest divisor of N (<= 8) such that the row slab stays modest.
    for cand in range(min(N, 8), 0, -1):
        if N % cand == 0 and cand * S <= 256:
            return cand
    return 1


def _block_cost_estimate(N, S, E, H, features):
    rows = N * S
    flops = 2 * rows * E * (3 * E)            # fused QKV
    flops += 4 * N * S * S * E                # QK^T + PV over all heads
    flops += 2 * rows * E * E                 # output projection
    fin = features[0]
    wbytes = (E * 3 * E + E * E) * 2 + (4 * E + 3 * E + E) * 4
    for fout in features[1:]:
        flops += 2 * rows * fin * fout
        wbytes += fin * fout * 2 + fout * 4
        fin = fout
    transcendentals = N * H * S * S + 4 * rows
    bytes_accessed = 2 * rows * E * 4 + wbytes
    return pl.CostEstimate(flops=int(flops),
                           transcendentals=int(transcendentals),
                           bytes_accessed=int(bytes_accessed))


def decoder_block(x, blk, *, n_heads):
    N, S, E = x.shape
    mlp = blk["mlp"]
    n_mlp = len(mlp)
    bt = _pick_batch_tile(N, S)

    # Matmul weights cast to bf16 once here (half the resident VMEM footprint);
    # biases / LN params stay f32 and are added to the f32 accumulators.
    weights = [
        blk["ln1_g"].reshape(1, E), blk["ln1_b"].reshape(1, E),
        blk["wqkv"].astype(MXU_DTYPE), blk["bqkv"].reshape(1, 3 * E),
        blk["wproj"].astype(MXU_DTYPE), blk["bproj"].reshape(1, E),
        blk["ln2_g"].reshape(1, E), blk["ln2_b"].reshape(1, E),
    ]
    feats = [E]
    for (w, b) in mlp:
        weights.append(w.astype(MXU_DTYPE))
        weights.append(b.reshape(1, w.shape[1]))
        feats.append(w.shape[1])

    rows_per_step = bt * S
    x2d = x.reshape(N * S, E)

    in_specs = [pl.BlockSpec((rows_per_step, E), lambda n: (n, 0))]
    for warr in weights:
        # Full-array blocks, index_map independent of the grid index ->
        # weights stay resident in VMEM across the batch grid axis.
        in_specs.append(pl.BlockSpec(warr.shape, lambda n: (0, 0)))

    kernel = functools.partial(_decoder_block_kernel,
                               n_heads=n_heads, n_mlp=n_mlp,
                               seq_len=S, batch_tile=bt,
                               scale=1.0 / math.sqrt(E))   # spec: 1/sqrt(d_embed)

    out2d = pl.pallas_call(
        kernel,
        out_shape=jax.ShapeDtypeStruct((N * S, E), jnp.float32),
        grid=(N // bt,),
        in_specs=in_specs,
        out_specs=pl.BlockSpec((rows_per_step, E), lambda n: (n, 0)),
        scratch_shapes=[pltpu.VMEM((rows_per_step, E), jnp.float32)],
        compiler_params=pltpu.CompilerParams(dimension_semantics=("parallel",)),
        cost_estimate=_block_cost_estimate(N, S, E, n_heads, feats),
    )(x2d, *weights)

    return out2d.reshape(N, S, E)


# --------------------------------------------------------------------------
# Tiled linear (vocab projection): grid + f32 accumulator scratch
# --------------------------------------------------------------------------
def _linear_tiled_kernel(x_ref, w_ref, b_ref, o_ref, acc_ref):
    k = pl.program_id(2)

    @pl.when(k == 0)
    def _():
        acc_ref[...] = jnp.zeros_like(acc_ref)

    acc_ref[...] += _mxu_dot(x_ref[...], w_ref[...])

    @pl.when(k == pl.num_programs(2) - 1)
    def _():
        o_ref[...] = acc_ref[...] + b_ref[...]


def _pick_tile(dim, candidates):
    for c in candidates:
        if c <= dim and dim % c == 0:
            return c
    return dim  # fall back to the full dimension (always legal)


def linear_tiled(x, w, b):
    M, K = x.shape
    Nn = w.shape[1]
    # Tile caps chosen so double-buffered tiles stay within v5e's 16 MiB
    # default scoped-VMEM limit (v6e/v7x have more headroom).
    tm = _pick_tile(M, (256, 128, 64, 32, 16, 8))
    tn = _pick_tile(Nn, (512, 256, 128))
    tk = _pick_tile(K, (1024, 512, 256, 128))
    grid = (M // tm, Nn // tn, K // tk)

    return pl.pallas_call(
        _linear_tiled_kernel,
        out_shape=jax.ShapeDtypeStruct((M, Nn), jnp.float32),
        grid=grid,
        in_specs=[
            pl.BlockSpec((tm, tk), lambda i, j, k: (i, k)),
            pl.BlockSpec((tk, tn), lambda i, j, k: (k, j)),   # weight: no M dep
            pl.BlockSpec((1, tn), lambda i, j, k: (0, j)),
        ],
        out_specs=pl.BlockSpec((tm, tn), lambda i, j, k: (i, j)),
        scratch_shapes=[pltpu.VMEM((tm, tn), jnp.float32)],
        compiler_params=pltpu.CompilerParams(
            dimension_semantics=("parallel", "parallel", "arbitrary")),
    )(x, w, b.reshape(1, Nn))


def output_projection(x2d, w_out, b_out):
    """Vocab projection with the output padded to a lane-dense multiple of 128."""
    V = w_out.shape[1]
    Vp = ((V + 127) // 128) * 128
    if Vp != V:
        w_out = jnp.pad(w_out, ((0, 0), (0, Vp - V)))
        b_out = jnp.pad(b_out, (0, Vp - V))
    logits = linear_tiled(x2d, w_out.astype(MXU_DTYPE), b_out)
    return logits[:, :V]


# --------------------------------------------------------------------------
# Parameter construction (deterministic, mirrors the torch __init__)
# --------------------------------------------------------------------------
def init_params(key, *, n_layers, d_embed, n_heads, features, max_seq_len,
                n_tokens, unk_index):
    def uni(k, shape):
        return jax.random.uniform(k, shape, jnp.float32, -0.1, 0.1)

    keys = iter(jax.random.split(key, 8 + n_layers * 16))

    params = {}
    # Embedding table: torch default N(0,1); padding_idx row zeroed.
    emb = jax.random.normal(next(keys), (n_tokens, d_embed), jnp.float32)
    emb = emb.at[unk_index].set(0.0)
    params["embed"] = emb

    # Sinusoidal positional encoding.
    pos = jnp.arange(max_seq_len, dtype=jnp.float32)[:, None]
    denom = jnp.exp(-jnp.arange(0, d_embed, 2, dtype=jnp.float32)
                    * math.log(10000.0) / d_embed)
    phase = pos * denom[None, :]
    pe = jnp.zeros((max_seq_len, d_embed), jnp.float32)
    pe = pe.at[:, 0::2].set(jnp.sin(phase))
    pe = pe.at[:, 1::2].set(jnp.cos(phase))
    params["pos_enc"] = pe

    blocks = []
    for _ in range(n_layers):
        wq = uni(next(keys), (d_embed, d_embed))
        wk = uni(next(keys), (d_embed, d_embed))
        wv = uni(next(keys), (d_embed, d_embed))
        blk = {
            "ln1_g": jnp.ones((d_embed,), jnp.float32),
            "ln1_b": jnp.zeros((d_embed,), jnp.float32),
            "wqkv": jnp.concatenate([wq, wk, wv], axis=1),   # (E, 3E) fused
            "bqkv": jnp.zeros((3 * d_embed,), jnp.float32),
            "wproj": uni(next(keys), (d_embed, d_embed)),
            "bproj": jnp.zeros((d_embed,), jnp.float32),
            "ln2_g": jnp.ones((d_embed,), jnp.float32),
            "ln2_b": jnp.zeros((d_embed,), jnp.float32),
            "mlp": [],
        }
        fin = features[0]
        for fout in features[1:]:
            blk["mlp"].append((uni(next(keys), (fin, fout)),
                               jnp.zeros((fout,), jnp.float32)))
            fin = fout
        blocks.append(blk)
    params["blocks"] = blocks

    params["w_out"] = uni(next(keys), (d_embed, n_tokens))
    params["b_out"] = jnp.zeros((n_tokens,), jnp.float32)
    return params


# --------------------------------------------------------------------------
# Forward pass (eval mode; dropout == identity)
# --------------------------------------------------------------------------
def attention_model_forward(params, indices, *, n_heads):
    N, S = indices.shape
    E = params["embed"].shape[1]

    # Embedding + positional encoding (cheap gather glue in plain JAX).
    x = params["embed"][indices] * math.sqrt(E)             # (N, S, E)
    x = x + params["pos_enc"][:S][None, :, :]

    for blk in params["blocks"]:
        x = decoder_block(x, blk, n_heads=n_heads)          # fused block kernel

    logits = output_projection(x.reshape(N * S, E),
                               params["w_out"], params["b_out"])
    return logits.reshape(N, S, -1)


# --------------------------------------------------------------------------
# Main
# --------------------------------------------------------------------------
if __name__ == "__main__":
    n_layers = 2
    d_embed = 32
    n_heads = 4
    features = [32, 64, 32]     # MLP must start/end at d_embed for the residual
    max_seq_len = 8
    n_tokens = 16
    unk_index = 0
    N, S = 2, 8

    assert features[0] == d_embed and features[-1] == d_embed

    key = jax.random.PRNGKey(0)
    pkey, ikey = jax.random.split(key)
    params = init_params(pkey, n_layers=n_layers, d_embed=d_embed,
                         n_heads=n_heads, features=features,
                         max_seq_len=max_seq_len, n_tokens=n_tokens,
                         unk_index=unk_index)

    indices = jax.random.randint(ikey, (N, S), 0, n_tokens, dtype=jnp.int32)

    forward = jax.jit(functools.partial(attention_model_forward, n_heads=n_heads))
    out = forward(params, indices)
    out = jax.block_until_ready(out)

    assert out.shape == (N, S, n_tokens)
    assert bool(jnp.all(jnp.isfinite(out)))
    print("KERNEL_OK")
</pallas_src>

<mosaic_0001>
module attributes {stable_mosaic.version = 11 : i64} {
  func.func @_decoder_block_kernel(%arg0: i32, %arg1: memref<16x32xf32, #tpu.memory_space<vmem>>, %arg2: memref<1x32xf32, #tpu.memory_space<vmem>>, %arg3: memref<1x32xf32, #tpu.memory_space<vmem>>, %arg4: memref<32x96xbf16, #tpu.memory_space<vmem>>, %arg5: memref<1x96xf32, #tpu.memory_space<vmem>>, %arg6: memref<32x32xbf16, #tpu.memory_space<vmem>>, %arg7: memref<1x32xf32, #tpu.memory_space<vmem>>, %arg8: memref<1x32xf32, #tpu.memory_space<vmem>>, %arg9: memref<1x32xf32, #tpu.memory_space<vmem>>, %arg10: memref<32x64xbf16, #tpu.memory_space<vmem>>, %arg11: memref<1x64xf32, #tpu.memory_space<vmem>>, %arg12: memref<64x32xbf16, #tpu.memory_space<vmem>>, %arg13: memref<1x32xf32, #tpu.memory_space<vmem>>, %arg14: memref<16x32xf32, #tpu.memory_space<vmem>>, %arg15: memref<16x32xf32, #tpu.memory_space<vmem>>) attributes {dimension_semantics = [#tpu.dimension_semantics<parallel>], iteration_bounds = array<i64: 1>, scalar_prefetch = 0 : i64, scratch_operands = 1 : i64, tpu.core_type = #tpu.core_type<tc>, window_params = [{transform_indices = @transform_0, window_bounds = array<i64: 16, 32>}, {pipeline_mode = #tpu.pipeline_mode<synchronous>, transform_indices = @transform_1, window_bounds = array<i64: 1, 32>}, {pipeline_mode = #tpu.pipeline_mode<synchronous>, transform_indices = @transform_2, window_bounds = array<i64: 1, 32>}, {pipeline_mode = #tpu.pipeline_mode<synchronous>, transform_indices = @transform_3, window_bounds = array<i64: 32, 96>}, {pipeline_mode = #tpu.pipeline_mode<synchronous>, transform_indices = @transform_4, window_bounds = array<i64: 1, 96>}, {pipeline_mode = #tpu.pipeline_mode<synchronous>, transform_indices = @transform_5, window_bounds = array<i64: 32, 32>}, {pipeline_mode = #tpu.pipeline_mode<synchronous>, transform_indices = @transform_6, window_bounds = array<i64: 1, 32>}, {pipeline_mode = #tpu.pipeline_mode<synchronous>, transform_indices = @transform_7, window_bounds = array<i64: 1, 32>}, {pipeline_mode = #tpu.pipeline_mode<synchronous>, transform_indices = @transform_8, window_bounds = array<i64: 1, 32>}, {pipeline_mode = #tpu.pipeline_mode<synchronous>, transform_indices = @transform_9, window_bounds = array<i64: 32, 64>}, {pipeline_mode = #tpu.pipeline_mode<synchronous>, transform_indices = @transform_10, window_bounds = array<i64: 1, 64>}, {pipeline_mode = #tpu.pipeline_mode<synchronous>, transform_indices = @transform_11, window_bounds = array<i64: 64, 32>}, {pipeline_mode = #tpu.pipeline_mode<synchronous>, transform_indices = @transform_12, window_bounds = array<i64: 1, 32>}, {transform_indices = @transform_13, window_bounds = array<i64: 16, 32>}]} {
    %c0 = arith.constant 0 : index
    %c0_0 = arith.constant 0 : index
    %0 = vector.load %arg1[%c0, %c0_0] : memref<16x32xf32, #tpu.memory_space<vmem>>, vector<16x32xf32>
    %c0_1 = arith.constant 0 : index
    %c0_2 = arith.constant 0 : index
    %1 = vector.load %arg2[%c0_1, %c0_2] : memref<1x32xf32, #tpu.memory_space<vmem>>, vector<1x32xf32>
    %c0_3 = arith.constant 0 : index
    %c0_4 = arith.constant 0 : index
    %2 = vector.load %arg3[%c0_3, %c0_4] : memref<1x32xf32, #tpu.memory_space<vmem>>, vector<1x32xf32>
    %cst = arith.constant dense<0.000000e+00> : vector<16xf32>
    %3 = vector.multi_reduction <add>, %0, %cst [1] : vector<16x32xf32> to vector<16xf32>
    %4 = vector.shape_cast %3 : vector<16xf32> to vector<16x1xf32>
    %cst_5 = arith.constant 3.200000e+01 : f32
    %5 = vector.broadcast %cst_5 : f32 to vector<16x1xf32>
    %6 = arith.divf %4, %5 : vector<16x1xf32>
    %7 = vector.broadcast %6 : vector<16x1xf32> to vector<16x32xf32>
    %8 = arith.subf %0, %7 : vector<16x32xf32>
    %9 = arith.mulf %8, %8 : vector<16x32xf32>
    %cst_6 = arith.constant dense<0.000000e+00> : vector<16xf32>
    %10 = vector.multi_reduction <add>, %9, %cst_6 [1] : vector<16x32xf32> to vector<16xf32>
    %11 = vector.shape_cast %10 : vector<16xf32> to vector<16x1xf32>
    %cst_7 = arith.constant 3.200000e+01 : f32
    %12 = vector.broadcast %cst_7 : f32 to vector<16x1xf32>
    %13 = arith.divf %11, %12 : vector<16x1xf32>
    %14 = vector.broadcast %6 : vector<16x1xf32> to vector<16x32xf32>
    %15 = arith.subf %0, %14 : vector<16x32xf32>
    %cst_8 = arith.constant 9.99999974E-6 : f32
    %16 = vector.broadcast %cst_8 : f32 to vector<16x1xf32>
    %17 = arith.addf %13, %16 : vector<16x1xf32>
    %18 = math.rsqrt %17 : vector<16x1xf32>
    %19 = vector.broadcast %18 : vector<16x1xf32> to vector<16x32xf32>
    %20 = arith.mulf %15, %19 : vector<16x32xf32>
    %21 = vector.broadcast %1 : vector<1x32xf32> to vector<16x32xf32>
    %22 = arith.mulf %20, %21 : vector<16x32xf32>
    %23 = vector.broadcast %2 : vector<1x32xf32> to vector<16x32xf32>
    %24 = arith.addf %22, %23 : vector<16x32xf32>
    %c0_9 = arith.constant 0 : index
    %c0_10 = arith.constant 0 : index
    %25 = vector.load %arg4[%c0_9, %c0_10] : memref<32x96xbf16, #tpu.memory_space<vmem>>, vector<32x96xbf16>
    %26 = arith.truncf %24 : vector<16x32xf32> to vector<16x32xbf16>
    %cst_11 = arith.constant dense<0.000000e+00> : vector<16x96xf32>
    %27 = tpu.matmul %26, %25, %cst_11 {dimension_numbers = #tpu.dot_dimension_numbers<[1], [0], [0], [1], [0, 0, 1, 1], [], []>} : vector<16x32xbf16>, vector<32x96xbf16>, vector<16x96xf32> -> vector<16x96xf32>
    %c0_12 = arith.constant 0 : index
    %c0_13 = arith.constant 0 : index
    %28 = vector.load %arg5[%c0_12, %c0_13] : memref<1x96xf32, #tpu.memory_space<vmem>>, vector<1x96xf32>
    %29 = vector.broadcast %28 : vector<1x96xf32> to vector<16x96xf32>
    %30 = arith.addf %27, %29 : vector<16x96xf32>
    %31 = tpu.iota {dimensions = array<i32: 0>} : vector<8x8xi32>
    %32 = tpu.iota {dimensions = array<i32: 1>} : vector<8x8xi32>
    %33 = arith.cmpi sgt, %32, %31 : vector<8x8xi32>
    %cst_14 = arith.constant -1.000000e+30 : f32
    %cst_15 = arith.constant 0.000000e+00 : f32
    %34 = vector.broadcast %cst_14 : f32 to vector<8x8xf32>
    %35 = vector.broadcast %cst_15 : f32 to vector<8x8xf32>
    %36 = arith.select %33, %34, %35 : vector<8x8xi1>, vector<8x8xf32>
    %37 = vector.extract_strided_slice %30 {offsets = [0, 0], sizes = [8, 8], strides = [1, 1]} : vector<16x96xf32> to vector<8x8xf32>
    %38 = vector.extract_strided_slice %30 {offsets = [0, 32], sizes = [8, 8], strides = [1, 1]} : vector<16x96xf32> to vector<8x8xf32>
    %39 = vector.extract_strided_slice %30 {offsets = [0, 64], sizes = [8, 8], strides = [1, 1]} : vector<16x96xf32> to vector<8x8xf32>
    %40 = arith.truncf %37 : vector<8x8xf32> to vector<8x8xbf16>
    %41 = arith.truncf %38 : vector<8x8xf32> to vector<8x8xbf16>
    %cst_16 = arith.constant dense<0.000000e+00> : vector<8x8xf32>
    %42 = tpu.matmul %40, %41, %cst_16 {dimension_numbers = #tpu.dot_dimension_numbers<[1], [1], [0], [0], [0, 0, 1, 0], [], []>} : vector<8x8xbf16>, vector<8x8xbf16>, vector<8x8xf32> -> vector<8x8xf32>
    %cst_17 = arith.constant 0.176776692 : f32
    %43 = vector.broadcast %cst_17 : f32 to vector<8x8xf32>
    %44 = arith.mulf %42, %43 : vector<8x8xf32>
    %45 = arith.addf %44, %36 : vector<8x8xf32>
    %cst_18 = arith.constant dense<0xFF800000> : vector<8xf32>
    %46 = vector.multi_reduction <maximumf>, %45, %cst_18 [1] : vector<8x8xf32> to vector<8xf32>
    %47 = vector.shape_cast %46 : vector<8xf32> to vector<8x1xf32>
    %48 = vector.broadcast %47 : vector<8x1xf32> to vector<8x8xf32>
    %49 = arith.subf %45, %48 : vector<8x8xf32>
    %50 = math.exp %49 : vector<8x8xf32>
    %cst_19 = arith.constant dense<0.000000e+00> : vector<8xf32>
    %51 = vector.multi_reduction <add>, %50, %cst_19 [1] : vector<8x8xf32> to vector<8xf32>
    %52 = vector.shape_cast %51 : vector<8xf32> to vector<8x1xf32>
    %53 = tpu.reciprocal %52 {approx = true} : vector<8x1xf32> -> vector<8x1xf32>
    %54 = vector.broadcast %53 : vector<8x1xf32> to vector<8x8xf32>
    %55 = arith.mulf %50, %54 : vector<8x8xf32>
    %56 = arith.truncf %55 : vector<8x8xf32> to vector<8x8xbf16>
    %57 = arith.truncf %39 : vector<8x8xf32> to vector<8x8xbf16>
    %cst_20 = arith.constant dense<0.000000e+00> : vector<8x8xf32>
    %58 = tpu.matmul %56, %57, %cst_20 {dimension_numbers = #tpu.dot_dimension_numbers<[1], [0], [0], [1], [0, 0, 1, 1], [], []>} : vector<8x8xbf16>, vector<8x8xbf16>, vector<8x8xf32> -> vector<8x8xf32>
    %c0_21 = arith.constant 0 : index
    %c0_22 = arith.constant 0 : index
    %59 = vector.load %arg15[%c0_21, %c0_22] : memref<16x32xf32, #tpu.memory_space<vmem>>, vector<8x8xf32>
    tpu.vector_store %arg15[%c0_21, %c0_22], %58 {strides = array<i32>} : memref<16x32xf32, #tpu.memory_space<vmem>>, vector<8x8xf32>,
    %60 = vector.extract_strided_slice %30 {offsets = [0, 8], sizes = [8, 8], strides = [1, 1]} : vector<16x96xf32> to vector<8x8xf32>
    %61 = vector.extract_strided_slice %30 {offsets = [0, 40], sizes = [8, 8], strides = [1, 1]} : vector<16x96xf32> to vector<8x8xf32>
    %62 = vector.extract_strided_slice %30 {offsets = [0, 72], sizes = [8, 8], strides = [1, 1]} : vector<16x96xf32> to vector<8x8xf32>
    %63 = arith.truncf %60 : vector<8x8xf32> to vector<8x8xbf16>
    %64 = arith.truncf %61 : vector<8x8xf32> to vector<8x8xbf16>
    %cst_23 = arith.constant dense<0.000000e+00> : vector<8x8xf32>
    %65 = tpu.matmul %63, %64, %cst_23 {dimension_numbers = #tpu.dot_dimension_numbers<[1], [1], [0], [0], [0, 0, 1, 0], [], []>} : vector<8x8xbf16>, vector<8x8xbf16>, vector<8x8xf32> -> vector<8x8xf32>
    %cst_24 = arith.constant 0.176776692 : f32
    %66 = vector.broadcast %cst_24 : f32 to vector<8x8xf32>
    %67 = arith.mulf %65, %66 : vector<8x8xf32>
    %68 = arith.addf %67, %36 : vector<8x8xf32>
    %cst_25 = arith.constant dense<0xFF800000> : vector<8xf32>
    %69 = vector.multi_reduction <maximumf>, %68, %cst_25 [1] : vector<8x8xf32> to vector<8xf32>
    %70 = vector.shape_cast %69 : vector<8xf32> to vector<8x1xf32>
    %71 = vector.broadcast %70 : vector<8x1xf32> to vector<8x8xf32>
    %72 = arith.subf %68, %71 : vector<8x8xf32>
    %73 = math.exp %72 : vector<8x8xf32>
    %cst_26 = arith.constant dense<0.000000e+00> : vector<8xf32>
    %74 = vector.multi_reduction <add>, %73, %cst_26 [1] : vector<8x8xf32> to vector<8xf32>
    %75 = vector.shape_cast %74 : vector<8xf32> to vector<8x1xf32>
    %76 = tpu.reciprocal %75 {approx = true} : vector<8x1xf32> -> vector<8x1xf32>
    %77 = vector.broadcast %76 : vector<8x1xf32> to vector<8x8xf32>
    %78 = arith.mulf %73, %77 : vector<8x8xf32>
    %79 = arith.truncf %78 : vector<8x8xf32> to vector<8x8xbf16>
    %80 = arith.truncf %62 : vector<8x8xf32> to vector<8x8xbf16>
    %cst_27 = arith.constant dense<0.000000e+00> : vector<8x8xf32>
    %81 = tpu.matmul %79, %80, %cst_27 {dimension_numbers = #tpu.dot_dimension_numbers<[1], [0], [0], [1], [0, 0, 1, 1], [], []>} : vector<8x8xbf16>, vector<8x8xbf16>, vector<8x8xf32> -> vector<8x8xf32>
    %c0_28 = arith.constant 0 : index
    %c8 = arith.constant 8 : index
    %82 = vector.load %arg15[%c0_28, %c8] : memref<16x32xf32, #tpu.memory_space<vmem>>, vector<8x8xf32>
    tpu.vector_store %arg15[%c0_28, %c8], %81 {strides = array<i32>} : memref<16x32xf32, #tpu.memory_space<vmem>>, vector<8x8xf32>,
    %83 = vector.extract_strided_slice %30 {offsets = [0, 16], sizes = [8, 8], strides = [1, 1]} : vector<16x96xf32> to vector<8x8xf32>
    %84 = vector.extract_strided_slice %30 {offsets = [0, 48], sizes = [8, 8], strides = [1, 1]} : vector<16x96xf32> to vector<8x8xf32>
    %85 = vector.extract_strided_slice %30 {offsets = [0, 80], sizes = [8, 8], strides = [1, 1]} : vector<16x96xf32> to vector<8x8xf32>
    %86 = arith.truncf %83 : vector<8x8xf32> to vector<8x8xbf16>
    %87 = arith.truncf %84 : vector<8x8xf32> to vector<8x8xbf16>
    %cst_29 = arith.constant dense<0.000000e+00> : vector<8x8xf32>
    %88 = tpu.matmul %86, %87, %cst_29 {dimension_numbers = #tpu.dot_dimension_numbers<[1], [1], [0], [0], [0, 0, 1, 0], [], []>} : vector<8x8xbf16>, vector<8x8xbf16>, vector<8x8xf32> -> vector<8x8xf32>
    %cst_30 = arith.constant 0.176776692 : f32
    %89 = vector.broadcast %cst_30 : f32 to vector<8x8xf32>
    %90 = arith.mulf %88, %89 : vector<8x8xf32>
    %91 = arith.addf %90, %36 : vector<8x8xf32>
    %cst_31 = arith.constant dense<0xFF800000> : vector<8xf32>
    %92 = vector.multi_reduction <maximumf>, %91, %cst_31 [1] : vector<8x8xf32> to vector<8xf32>
    %93 = vector.shape_cast %92 : vector<8xf32> to vector<8x1xf32>
    %94 = vector.broadcast %93 : vector<8x1xf32> to vector<8x8xf32>
    %95 = arith.subf %91, %94 : vector<8x8xf32>
    %96 = math.exp %95 : vector<8x8xf32>
    %cst_32 = arith.constant dense<0.000000e+00> : vector<8xf32>
    %97 = vector.multi_reduction <add>, %96, %cst_32 [1] : vector<8x8xf32> to vector<8xf32>
    %98 = vector.shape_cast %97 : vector<8xf32> to vector<8x1xf32>
    %99 = tpu.reciprocal %98 {approx = true} : vector<8x1xf32> -> vector<8x1xf32>
    %100 = vector.broadcast %99 : vector<8x1xf32> to vector<8x8xf32>
    %101 = arith.mulf %96, %100 : vector<8x8xf32>
    %102 = arith.truncf %101 : vector<8x8xf32> to vector<8x8xbf16>
    %103 = arith.truncf %85 : vector<8x8xf32> to vector<8x8xbf16>
    %cst_33 = arith.constant dense<0.000000e+00> : vector<8x8xf32>
    %104 = tpu.matmul %102, %103, %cst_33 {dimension_numbers = #tpu.dot_dimension_numbers<[1], [0], [0], [1], [0, 0, 1, 1], [], []>} : vector<8x8xbf16>, vector<8x8xbf16>, vector<8x8xf32> -> vector<8x8xf32>
    %c0_34 = arith.constant 0 : index
    %c16 = arith.constant 16 : index
    %105 = vector.load %arg15[%c0_34, %c16] : memref<16x32xf32, #tpu.memory_space<vmem>>, vector<8x8xf32>
    tpu.vector_store %arg15[%c0_34, %c16], %104 {strides = array<i32>} : memref<16x32xf32, #tpu.memory_space<vmem>>, vector<8x8xf32>,
    %106 = vector.extract_strided_slice %30 {offsets = [0, 24], sizes = [8, 8], strides = [1, 1]} : vector<16x96xf32> to vector<8x8xf32>
    %107 = vector.extract_strided_slice %30 {offsets = [0, 56], sizes = [8, 8], strides = [1, 1]} : vector<16x96xf32> to vector<8x8xf32>
    %108 = vector.extract_strided_slice %30 {offsets = [0, 88], sizes = [8, 8], strides = [1, 1]} : vector<16x96xf32> to vector<8x8xf32>
    %109 = arith.truncf %106 : vector<8x8xf32> to vector<8x8xbf16>
    %110 = arith.truncf %107 : vector<8x8xf32> to vector<8x8xbf16>
    %cst_35 = arith.constant dense<0.000000e+00> : vector<8x8xf32>
    %111 = tpu.matmul %109, %110, %cst_35 {dimension_numbers = #tpu.dot_dimension_numbers<[1], [1], [0], [0], [0, 0, 1, 0], [], []>} : vector<8x8xbf16>, vector<8x8xbf16>, vector<8x8xf32> -> vector<8x8xf32>
    %cst_36 = arith.constant 0.176776692 : f32
    %112 = vector.broadcast %cst_36 : f32 to vector<8x8xf32>
    %113 = arith.mulf %111, %112 : vector<8x8xf32>
    %114 = arith.addf %113, %36 : vector<8x8xf32>
    %cst_37 = arith.constant dense<0xFF800000> : vector<8xf32>
    %115 = vector.multi_reduction <maximumf>, %114, %cst_37 [1] : vector<8x8xf32> to vector<8xf32>
    %116 = vector.shape_cast %115 : vector<8xf32> to vector<8x1xf32>
    %117 = vector.broadcast %116 : vector<8x1xf32> to vector<8x8xf32>
    %118 = arith.subf %114, %117 : vector<8x8xf32>
    %119 = math.exp %118 : vector<8x8xf32>
    %cst_38 = arith.constant dense<0.000000e+00> : vector<8xf32>
    %120 = vector.multi_reduction <add>, %119, %cst_38 [1] : vector<8x8xf32> to vector<8xf32>
    %121 = vector.shape_cast %120 : vector<8xf32> to vector<8x1xf32>
    %122 = tpu.reciprocal %121 {approx = true} : vector<8x1xf32> -> vector<8x1xf32>
    %123 = vector.broadcast %122 : vector<8x1xf32> to vector<8x8xf32>
    %124 = arith.mulf %119, %123 : vector<8x8xf32>
    %125 = arith.truncf %124 : vector<8x8xf32> to vector<8x8xbf16>
    %126 = arith.truncf %108 : vector<8x8xf32> to vector<8x8xbf16>
    %cst_39 = arith.constant dense<0.000000e+00> : vector<8x8xf32>
    %127 = tpu.matmul %125, %126, %cst_39 {dimension_numbers = #tpu.dot_dimension_numbers<[1], [0], [0], [1], [0, 0, 1, 1], [], []>} : vector<8x8xbf16>, vector<8x8xbf16>, vector<8x8xf32> -> vector<8x8xf32>
    %c0_40 = arith.constant 0 : index
    %c24 = arith.constant 24 : index
    %128 = vector.load %arg15[%c0_40, %c24] : memref<16x32xf32, #tpu.memory_space<vmem>>, vector<8x8xf32>
    tpu.vector_store %arg15[%c0_40, %c24], %127 {strides = array<i32>} : memref<16x32xf32, #tpu.memory_space<vmem>>, vector<8x8xf32>,
    %129 = vector.extract_strided_slice %30 {offsets = [8, 0], sizes = [8, 8], strides = [1, 1]} : vector<16x96xf32> to vector<8x8xf32>
    %130 = vector.extract_strided_slice %30 {offsets = [8, 32], sizes = [8, 8], strides = [1, 1]} : vector<16x96xf32> to vector<8x8xf32>
    %131 = vector.extract_strided_slice %30 {offsets = [8, 64], sizes = [8, 8], strides = [1, 1]} : vector<16x96xf32> to vector<8x8xf32>
    %132 = arith.truncf %129 : vector<8x8xf32> to vector<8x8xbf16>
    %133 = arith.truncf %130 : vector<8x8xf32> to vector<8x8xbf16>
    %cst_41 = arith.constant dense<0.000000e+00> : vector<8x8xf32>
    %134 = tpu.matmul %132, %133, %cst_41 {dimension_numbers = #tpu.dot_dimension_numbers<[1], [1], [0], [0], [0, 0, 1, 0], [], []>} : vector<8x8xbf16>, vector<8x8xbf16>, vector<8x8xf32> -> vector<8x8xf32>
    %cst_42 = arith.constant 0.176776692 : f32
    %135 = vector.broadcast %cst_42 : f32 to vector<8x8xf32>
    %136 = arith.mulf %134, %135 : vector<8x8xf32>
    %137 = arith.addf %136, %36 : vector<8x8xf32>
    %cst_43 = arith.constant dense<0xFF800000> : vector<8xf32>
    %138 = vector.multi_reduction <maximumf>, %137, %cst_43 [1] : vector<8x8xf32> to vector<8xf32>
    %139 = vector.shape_cast %138 : vector<8xf32> to vector<8x1xf32>
    %140 = vector.broadcast %139 : vector<8x1xf32> to vector<8x8xf32>
    %141 = arith.subf %137, %140 : vector<8x8xf32>
    %142 = math.exp %141 : vector<8x8xf32>
    %cst_44 = arith.constant dense<0.000000e+00> : vector<8xf32>
    %143 = vector.multi_reduction <add>, %142, %cst_44 [1] : vector<8x8xf32> to vector<8xf32>
    %144 = vector.shape_cast %143 : vector<8xf32> to vector<8x1xf32>
    %145 = tpu.reciprocal %144 {approx = true} : vector<8x1xf32> -> vector<8x1xf32>
    %146 = vector.broadcast %145 : vector<8x1xf32> to vector<8x8xf32>
    %147 = arith.mulf %142, %146 : vector<8x8xf32>
    %148 = arith.truncf %147 : vector<8x8xf32> to vector<8x8xbf16>
    %149 = arith.truncf %131 : vector<8x8xf32> to vector<8x8xbf16>
    %cst_45 = arith.constant dense<0.000000e+00> : vector<8x8xf32>
    %150 = tpu.matmul %148, %149, %cst_45 {dimension_numbers = #tpu.dot_dimension_numbers<[1], [0], [0], [1], [0, 0, 1, 1], [], []>} : vector<8x8xbf16>, vector<8x8xbf16>, vector<8x8xf32> -> vector<8x8xf32>
    %c8_46 = arith.constant 8 : index
    %c0_47 = arith.constant 0 : index
    %151 = vector.load %arg15[%c8_46, %c0_47] : memref<16x32xf32, #tpu.memory_space<vmem>>, vector<8x8xf32>
    tpu.vector_store %arg15[%c8_46, %c0_47], %150 {strides = array<i32>} : memref<16x32xf32, #tpu.memory_space<vmem>>, vector<8x8xf32>,
    %152 = vector.extract_strided_slice %30 {offsets = [8, 8], sizes = [8, 8], strides = [1, 1]} : vector<16x96xf32> to vector<8x8xf32>
    %153 = vector.extract_strided_slice %30 {offsets = [8, 40], sizes = [8, 8], strides = [1, 1]} : vector<16x96xf32> to vector<8x8xf32>
    %154 = vector.extract_strided_slice %30 {offsets = [8, 72], sizes = [8, 8], strides = [1, 1]} : vector<16x96xf32> to vector<8x8xf32>
    %155 = arith.truncf %152 : vector<8x8xf32> to vector<8x8xbf16>
    %156 = arith.truncf %153 : vector<8x8xf32> to vector<8x8xbf16>
    %cst_48 = arith.constant dense<0.000000e+00> : vector<8x8xf32>
    %157 = tpu.matmul %155, %156, %cst_48 {dimension_numbers = #tpu.dot_dimension_numbers<[1], [1], [0], [0], [0, 0, 1, 0], [], []>} : vector<8x8xbf16>, vector<8x8xbf16>, vector<8x8xf32> -> vector<8x8xf32>
    %cst_49 = arith.constant 0.176776692 : f32
    %158 = vector.broadcast %cst_49 : f32 to vector<8x8xf32>
    %159 = arith.mulf %157, %158 : vector<8x8xf32>
    %160 = arith.addf %159, %36 : vector<8x8xf32>
    %cst_50 = arith.constant dense<0xFF800000> : vector<8xf32>
    %161 = vector.multi_reduction <maximumf>, %160, %cst_50 [1] : vector<8x8xf32> to vector<8xf32>
    %162 = vector.shape_cast %161 : vector<8xf32> to vector<8x1xf32>
    %163 = vector.broadcast %162 : vector<8x1xf32> to vector<8x8xf32>
    %164 = arith.subf %160, %163 : vector<8x8xf32>
    %165 = math.exp %164 : vector<8x8xf32>
    %cst_51 = arith.constant dense<0.000000e+00> : vector<8xf32>
    %166 = vector.multi_reduction <add>, %165, %cst_51 [1] : vector<8x8xf32> to vector<8xf32>
    %167 = vector.shape_cast %166 : vector<8xf32> to vector<8x1xf32>
    %168 = tpu.reciprocal %167 {approx = true} : vector<8x1xf32> -> vector<8x1xf32>
    %169 = vector.broadcast %168 : vector<8x1xf32> to vector<8x8xf32>
    %170 = arith.mulf %165, %169 : vector<8x8xf32>
    %171 = arith.truncf %170 : vector<8x8xf32> to vector<8x8xbf16>
    %172 = arith.truncf %154 : vector<8x8xf32> to vector<8x8xbf16>
    %cst_52 = arith.constant dense<0.000000e+00> : vector<8x8xf32>
    %173 = tpu.matmul %171, %172, %cst_52 {dimension_numbers = #tpu.dot_dimension_numbers<[1], [0], [0], [1], [0, 0, 1, 1], [], []>} : vector<8x8xbf16>, vector<8x8xbf16>, vector<8x8xf32> -> vector<8x8xf32>
    %c8_53 = arith.constant 8 : index
    %c8_54 = arith.constant 8 : index
    %174 = vector.load %arg15[%c8_53, %c8_54] : memref<16x32xf32, #tpu.memory_space<vmem>>, vector<8x8xf32>
    tpu.vector_store %arg15[%c8_53, %c8_54], %173 {strides = array<i32>} : memref<16x32xf32, #tpu.memory_space<vmem>>, vector<8x8xf32>,
    %175 = vector.extract_strided_slice %30 {offsets = [8, 16], sizes = [8, 8], strides = [1, 1]} : vector<16x96xf32> to vector<8x8xf32>
    %176 = vector.extract_strided_slice %30 {offsets = [8, 48], sizes = [8, 8], strides = [1, 1]} : vector<16x96xf32> to vector<8x8xf32>
    %177 = vector.extract_strided_slice %30 {offsets = [8, 80], sizes = [8, 8], strides = [1, 1]} : vector<16x96xf32> to vector<8x8xf32>
    %178 = arith.truncf %175 : vector<8x8xf32> to vector<8x8xbf16>
    %179 = arith.truncf %176 : vector<8x8xf32> to vector<8x8xbf16>
    %cst_55 = arith.constant dense<0.000000e+00> : vector<8x8xf32>
    %180 = tpu.matmul %178, %179, %cst_55 {dimension_numbers = #tpu.dot_dimension_numbers<[1], [1], [0], [0], [0, 0, 1, 0], [], []>} : vector<8x8xbf16>, vector<8x8xbf16>, vector<8x8xf32> -> vector<8x8xf32>
    %cst_56 = arith.constant 0.176776692 : f32
    %181 = vector.broadcast %cst_56 : f32 to vector<8x8xf32>
    %182 = arith.mulf %180, %181 : vector<8x8xf32>
    %183 = arith.addf %182, %36 : vector<8x8xf32>
    %cst_57 = arith.constant dense<0xFF800000> : vector<8xf32>
    %184 = vector.multi_reduction <maximumf>, %183, %cst_57 [1] : vector<8x8xf32> to vector<8xf32>
    %185 = vector.shape_cast %184 : vector<8xf32> to vector<8x1xf32>
    %186 = vector.broadcast %185 : vector<8x1xf32> to vector<8x8xf32>
    %187 = arith.subf %183, %186 : vector<8x8xf32>
    %188 = math.exp %187 : vector<8x8xf32>
    %cst_58 = arith.constant dense<0.000000e+00> : vector<8xf32>
    %189 = vector.multi_reduction <add>, %188, %cst_58 [1] : vector<8x8xf32> to vector<8xf32>
    %190 = vector.shape_cast %189 : vector<8xf32> to vector<8x1xf32>
    %191 = tpu.reciprocal %190 {approx = true} : vector<8x1xf32> -> vector<8x1xf32>
    %192 = vector.broadcast %191 : vector<8x1xf32> to vector<8x8xf32>
    %193 = arith.mulf %188, %192 : vector<8x8xf32>
    %194 = arith.truncf %193 : vector<8x8xf32> to vector<8x8xbf16>
    %195 = arith.truncf %177 : vector<8x8xf32> to vector<8x8xbf16>
    %cst_59 = arith.constant dense<0.000000e+00> : vector<8x8xf32>
    %196 = tpu.matmul %194, %195, %cst_59 {dimension_numbers = #tpu.dot_dimension_numbers<[1], [0], [0], [1], [0, 0, 1, 1], [], []>} : vector<8x8xbf16>, vector<8x8xbf16>, vector<8x8xf32> -> vector<8x8xf32>
    %c8_60 = arith.constant 8 : index
    %c16_61 = arith.constant 16 : index
    %197 = vector.load %arg15[%c8_60, %c16_61] : memref<16x32xf32, #tpu.memory_space<vmem>>, vector<8x8xf32>
    tpu.vector_store %arg15[%c8_60, %c16_61], %196 {strides = array<i32>} : memref<16x32xf32, #tpu.memory_space<vmem>>, vector<8x8xf32>,
    %198 = vector.extract_strided_slice %30 {offsets = [8, 24], sizes = [8, 8], strides = [1, 1]} : vector<16x96xf32> to vector<8x8xf32>
    %199 = vector.extract_strided_slice %30 {offsets = [8, 56], sizes = [8, 8], strides = [1, 1]} : vector<16x96xf32> to vector<8x8xf32>
    %200 = vector.extract_strided_slice %30 {offsets = [8, 88], sizes = [8, 8], strides = [1, 1]} : vector<16x96xf32> to vector<8x8xf32>
    %201 = arith.truncf %198 : vector<8x8xf32> to vector<8x8xbf16>
    %202 = arith.truncf %199 : vector<8x8xf32> to vector<8x8xbf16>
    %cst_62 = arith.constant dense<0.000000e+00> : vector<8x8xf32>
    %203 = tpu.matmul %201, %202, %cst_62 {dimension_numbers = #tpu.dot_dimension_numbers<[1], [1], [0], [0], [0, 0, 1, 0], [], []>} : vector<8x8xbf16>, vector<8x8xbf16>, vector<8x8xf32> -> vector<8x8xf32>
    %cst_63 = arith.constant 0.176776692 : f32
    %204 = vector.broadcast %cst_63 : f32 to vector<8x8xf32>
    %205 = arith.mulf %203, %204 : vector<8x8xf32>
    %206 = arith.addf %205, %36 : vector<8x8xf32>
    %cst_64 = arith.constant dense<0xFF800000> : vector<8xf32>
    %207 = vector.multi_reduction <maximumf>, %206, %cst_64 [1] : vector<8x8xf32> to vector<8xf32>
    %208 = vector.shape_cast %207 : vector<8xf32> to vector<8x1xf32>
    %209 = vector.broadcast %208 : vector<8x1xf32> to vector<8x8xf32>
    %210 = arith.subf %206, %209 : vector<8x8xf32>
    %211 = math.exp %210 : vector<8x8xf32>
    %cst_65 = arith.constant dense<0.000000e+00> : vector<8xf32>
    %212 = vector.multi_reduction <add>, %211, %cst_65 [1] : vector<8x8xf32> to vector<8xf32>
    %213 = vector.shape_cast %212 : vector<8xf32> to vector<8x1xf32>
    %214 = tpu.reciprocal %213 {approx = true} : vector<8x1xf32> -> vector<8x1xf32>
    %215 = vector.broadcast %214 : vector<8x1xf32> to vector<8x8xf32>
    %216 = arith.mulf %211, %215 : vector<8x8xf32>
    %217 = arith.truncf %216 : vector<8x8xf32> to vector<8x8xbf16>
    %218 = arith.truncf %200 : vector<8x8xf32> to vector<8x8xbf16>
    %cst_66 = arith.constant dense<0.000000e+00> : vector<8x8xf32>
    %219 = tpu.matmul %217, %218, %cst_66 {dimension_numbers = #tpu.dot_dimension_numbers<[1], [0], [0], [1], [0, 0, 1, 1], [], []>} : vector<8x8xbf16>, vector<8x8xbf16>, vector<8x8xf32> -> vector<8x8xf32>
    %c8_67 = arith.constant 8 : index
    %c24_68 = arith.constant 24 : index
    %220 = vector.load %arg15[%c8_67, %c24_68] : memref<16x32xf32, #tpu.memory_space<vmem>>, vector<8x8xf32>
    tpu.vector_store %arg15[%c8_67, %c24_68], %219 {strides = array<i32>} : memref<16x32xf32, #tpu.memory_space<vmem>>, vector<8x8xf32>,
    %c0_69 = arith.constant 0 : index
    %c0_70 = arith.constant 0 : index
    %221 = vector.load %arg15[%c0_69, %c0_70] : memref<16x32xf32, #tpu.memory_space<vmem>>, vector<16x32xf32>
    %c0_71 = arith.constant 0 : index
    %c0_72 = arith.constant 0 : index
    %222 = vector.load %arg6[%c0_71, %c0_72] : memref<32x32xbf16, #tpu.memory_space<vmem>>, vector<32x32xbf16>
    %223 = arith.truncf %221 : vector<16x32xf32> to vector<16x32xbf16>
    %cst_73 = arith.constant dense<0.000000e+00> : vector<16x32xf32>
    %224 = tpu.matmul %223, %222, %cst_73 {dimension_numbers = #tpu.dot_dimension_numbers<[1], [0], [0], [1], [0, 0, 1, 1], [], []>} : vector<16x32xbf16>, vector<32x32xbf16>, vector<16x32xf32> -> vector<16x32xf32>
    %c0_74 = arith.constant 0 : index
    %c0_75 = arith.constant 0 : index
    %225 = vector.load %arg7[%c0_74, %c0_75] : memref<1x32xf32, #tpu.memory_space<vmem>>, vector<1x32xf32>
    %226 = vector.broadcast %225 : vector<1x32xf32> to vector<16x32xf32>
    %227 = arith.addf %224, %226 : vector<16x32xf32>
    %228 = arith.addf %24, %227 : vector<16x32xf32>
    %c0_76 = arith.constant 0 : index
    %c0_77 = arith.constant 0 : index
    %229 = vector.load %arg8[%c0_76, %c0_77] : memref<1x32xf32, #tpu.memory_space<vmem>>, vector<1x32xf32>
    %c0_78 = arith.constant 0 : index
    %c0_79 = arith.constant 0 : index
    %230 = vector.load %arg9[%c0_78, %c0_79] : memref<1x32xf32, #tpu.memory_space<vmem>>, vector<1x32xf32>
    %cst_80 = arith.constant dense<0.000000e+00> : vector<16xf32>
    %231 = vector.multi_reduction <add>, %228, %cst_80 [1] : vector<16x32xf32> to vector<16xf32>
    %232 = vector.shape_cast %231 : vector<16xf32> to vector<16x1xf32>
    %cst_81 = arith.constant 3.200000e+01 : f32
    %233 = vector.broadcast %cst_81 : f32 to vector<16x1xf32>
    %234 = arith.divf %232, %233 : vector<16x1xf32>
    %235 = vector.broadcast %234 : vector<16x1xf32> to vector<16x32xf32>
    %236 = arith.subf %228, %235 : vector<16x32xf32>
    %237 = arith.mulf %236, %236 : vector<16x32xf32>
    %cst_82 = arith.constant dense<0.000000e+00> : vector<16xf32>
    %238 = vector.multi_reduction <add>, %237, %cst_82 [1] : vector<16x32xf32> to vector<16xf32>
    %239 = vector.shape_cast %238 : vector<16xf32> to vector<16x1xf32>
    %cst_83 = arith.constant 3.200000e+01 : f32
    %240 = vector.broadcast %cst_83 : f32 to vector<16x1xf32>
    %241 = arith.divf %239, %240 : vector<16x1xf32>
    %242 = vector.broadcast %234 : vector<16x1xf32> to vector<16x32xf32>
    %243 = arith.subf %228, %242 : vector<16x32xf32>
    %cst_84 = arith.constant 9.99999974E-6 : f32
    %244 = vector.broadcast %cst_84 : f32 to vector<16x1xf32>
    %245 = arith.addf %241, %244 : vector<16x1xf32>
    %246 = math.rsqrt %245 : vector<16x1xf32>
    %247 = vector.broadcast %246 : vector<16x1xf32> to vector<16x32xf32>
    %248 = arith.mulf %243, %247 : vector<16x32xf32>
    %249 = vector.broadcast %229 : vector<1x32xf32> to vector<16x32xf32>
    %250 = arith.mulf %248, %249 : vector<16x32xf32>
    %251 = vector.broadcast %230 : vector<1x32xf32> to vector<16x32xf32>
    %252 = arith.addf %250, %251 : vector<16x32xf32>
    %c0_85 = arith.constant 0 : index
    %c0_86 = arith.constant 0 : index
    %253 = vector.load %arg10[%c0_85, %c0_86] : memref<32x64xbf16, #tpu.memory_space<vmem>>, vector<32x64xbf16>
    %254 = arith.truncf %252 : vector<16x32xf32> to vector<16x32xbf16>
    %cst_87 = arith.constant dense<0.000000e+00> : vector<16x64xf32>
    %255 = tpu.matmul %254, %253, %cst_87 {dimension_numbers = #tpu.dot_dimension_numbers<[1], [0], [0], [1], [0, 0, 1, 1], [], []>} : vector<16x32xbf16>, vector<32x64xbf16>, vector<16x64xf32> -> vector<16x64xf32>
    %c0_88 = arith.constant 0 : index
    %c0_89 = arith.constant 0 : index
    %256 = vector.load %arg11[%c0_88, %c0_89] : memref<1x64xf32, #tpu.memory_space<vmem>>, vector<1x64xf32>
    %257 = vector.broadcast %256 : vector<1x64xf32> to vector<16x64xf32>
    %258 = arith.addf %255, %257 : vector<16x64xf32>
    %cst_90 = arith.constant 0.000000e+00 : f32
    %259 = vector.broadcast %cst_90 : f32 to vector<16x64xf32>
    %260 = arith.maximumf %258, %259 : vector<16x64xf32>
    %c0_91 = arith.constant 0 : index
    %c0_92 = arith.constant 0 : index
    %261 = vector.load %arg12[%c0_91, %c0_92] : memref<64x32xbf16, #tpu.memory_space<vmem>>, vector<64x32xbf16>
    %262 = arith.truncf %260 : vector<16x64xf32> to vector<16x64xbf16>
    %cst_93 = arith.constant dense<0.000000e+00> : vector<16x32xf32>
    %263 = tpu.matmul %262, %261, %cst_93 {dimension_numbers = #tpu.dot_dimension_numbers<[1], [0], [0], [1], [0, 0, 1, 1], [], []>} : vector<16x64xbf16>, vector<64x32xbf16>, vector<16x32xf32> -> vector<16x32xf32>
    %c0_94 = arith.constant 0 : index
    %c0_95 = arith.constant 0 : index
    %264 = vector.load %arg13[%c0_94, %c0_95] : memref<1x32xf32, #tpu.memory_space<vmem>>, vector<1x32xf32>
    %265 = vector.broadcast %264 : vector<1x32xf32> to vector<16x32xf32>
    %266 = arith.addf %263, %265 : vector<16x32xf32>
    %cst_96 = arith.constant 0.000000e+00 : f32
    %267 = vector.broadcast %cst_96 : f32 to vector<16x32xf32>
    %268 = arith.maximumf %266, %267 : vector<16x32xf32>
    %269 = arith.addf %228, %268 : vector<16x32xf32>
    %c0_97 = arith.constant 0 : index
    %c0_98 = arith.constant 0 : index
    %270 = vector.load %arg14[%c0_97, %c0_98] : memref<16x32xf32, #tpu.memory_space<vmem>>, vector<16x32xf32>
    tpu.vector_store %arg14[%c0_97, %c0_98], %269 {strides = array<i32>} : memref<16x32xf32, #tpu.memory_space<vmem>>, vector<16x32xf32>,
    return
  }
  func.func @transform_0(%arg0: i32) -> (i32, i32) {
    %c0_i32 = arith.constant 0 : i32
    %c0_i32_0 = arith.constant 0 : i32
    return %arg0, %c0_i32 : i32, i32
  }
  func.func @transform_1(%arg0: i32) -> (i32, i32) {
    %c0_i32 = arith.constant 0 : i32
    %c0_i32_0 = arith.constant 0 : i32
    %c0_i32_1 = arith.constant 0 : i32
    return %c0_i32, %c0_i32_0 : i32, i32
  }
  func.func @transform_2(%arg0: i32) -> (i32, i32) {
    %c0_i32 = arith.constant 0 : i32
    %c0_i32_0 = arith.constant 0 : i32
    %c0_i32_1 = arith.constant 0 : i32
    return %c0_i32, %c0_i32_0 : i32, i32
  }
  func.func @transform_3(%arg0: i32) -> (i32, i32) {
    %c0_i32 = arith.constant 0 : i32
    %c0_i32_0 = arith.constant 0 : i32
    %c0_i32_1 = arith.constant 0 : i32
    return %c0_i32, %c0_i32_0 : i32, i32
  }
  func.func @transform_4(%arg0: i32) -> (i32, i32) {
    %c0_i32 = arith.constant 0 : i32
    %c0_i32_0 = arith.constant 0 : i32
    %c0_i32_1 = arith.constant 0 : i32
    return %c0_i32, %c0_i32_0 : i32, i32
  }
  func.func @transform_5(%arg0: i32) -> (i32, i32) {
    %c0_i32 = arith.constant 0 : i32
    %c0_i32_0 = arith.constant 0 : i32
    %c0_i32_1 = arith.constant 0 : i32
    return %c0_i32, %c0_i32_0 : i32, i32
  }
  func.func @transform_6(%arg0: i32) -> (i32, i32) {
    %c0_i32 = arith.constant 0 : i32
    %c0_i32_0 = arith.constant 0 : i32
    %c0_i32_1 = arith.constant 0 : i32
    return %c0_i32, %c0_i32_0 : i32, i32
  }
  func.func @transform_7(%arg0: i32) -> (i32, i32) {
    %c0_i32 = arith.constant 0 : i32
    %c0_i32_0 = arith.constant 0 : i32
    %c0_i32_1 = arith.constant 0 : i32
    return %c0_i32, %c0_i32_0 : i32, i32
  }
  func.func @transform_8(%arg0: i32) -> (i32, i32) {
    %c0_i32 = arith.constant 0 : i32
    %c0_i32_0 = arith.constant 0 : i32
    %c0_i32_1 = arith.constant 0 : i32
    return %c0_i32, %c0_i32_0 : i32, i32
  }
  func.func @transform_9(%arg0: i32) -> (i32, i32) {
    %c0_i32 = arith.constant 0 : i32
    %c0_i32_0 = arith.constant 0 : i32
    %c0_i32_1 = arith.constant 0 : i32
    return %c0_i32, %c0_i32_0 : i32, i32
  }
  func.func @transform_10(%arg0: i32) -> (i32, i32) {
    %c0_i32 = arith.constant 0 : i32
    %c0_i32_0 = arith.constant 0 : i32
    %c0_i32_1 = arith.constant 0 : i32
    return %c0_i32, %c0_i32_0 : i32, i32
  }
  func.func @transform_11(%arg0: i32) -> (i32, i32) {
    %c0_i32 = arith.constant 0 : i32
    %c0_i32_0 = arith.constant 0 : i32
    %c0_i32_1 = arith.constant 0 : i32
    return %c0_i32, %c0_i32_0 : i32, i32
  }
  func.func @transform_12(%arg0: i32) -> (i32, i32) {
    %c0_i32 = arith.constant 0 : i32
    %c0_i32_0 = arith.constant 0 : i32
    %c0_i32_1 = arith.constant 0 : i32
    return %c0_i32, %c0_i32_0 : i32, i32
  }
  func.func @transform_13(%arg0: i32) -> (i32, i32) {
    %c0_i32 = arith.constant 0 : i32
    %c0_i32_0 = arith.constant 0 : i32
    return %arg0, %c0_i32 : i32, i32
  }
}

module attributes {stable_mosaic.version = 11 : i64} {
  func.func @_linear_tiled_kernel(%arg0: i32, %arg1: i32, %arg2: i32, %arg3: memref<16x32xf32, #tpu.memory_space<vmem>>, %arg4: memref<32x128xbf16, #tpu.memory_space<vmem>>, %arg5: memref<1x128xf32, #tpu.memory_space<vmem>>, %arg6: memref<16x128xf32, #tpu.memory_space<vmem>>, %arg7: memref<16x128xf32, #tpu.memory_space<vmem>>) attributes {dimension_semantics = [#tpu.dimension_semantics<parallel>, #tpu.dimension_semantics<parallel>, #tpu.dimension_semantics<arbitrary>], iteration_bounds = array<i64: 1, 1, 1>, scalar_prefetch = 0 : i64, scratch_operands = 1 : i64, tpu.core_type = #tpu.core_type<tc>, window_params = [{transform_indices = @transform_0, window_bounds = array<i64: 16, 32>}, {transform_indices = @transform_1, window_bounds = array<i64: 32, 128>}, {transform_indices = @transform_2, window_bounds = array<i64: 1, 128>}, {transform_indices = @transform_3, window_bounds = array<i64: 16, 128>}]} {
    %c0_i32 = arith.constant 0 : i32
    %0 = arith.cmpi eq, %arg2, %c0_i32 : i32
    %1 = arith.extui %0 : i1 to i32
    %c0_i32_0 = arith.constant 0 : i32
    %2 = arith.cmpi ne, %1, %c0_i32_0 : i32
    scf.if %2 {
      %cst_10 = arith.constant 0.000000e+00 : f32
      %13 = vector.broadcast %cst_10 : f32 to vector<16x128xf32>
      %c0_11 = arith.constant 0 : index
      %c0_12 = arith.constant 0 : index
      %14 = vector.load %arg7[%c0_11, %c0_12] : memref<16x128xf32, #tpu.memory_space<vmem>>, vector<16x128xf32>
      tpu.vector_store %arg7[%c0_11, %c0_12], %13 {strides = array<i32>} : memref<16x128xf32, #tpu.memory_space<vmem>>, vector<16x128xf32>,
    } else {
    }
    %c0 = arith.constant 0 : index
    %c0_1 = arith.constant 0 : index
    %3 = vector.load %arg7[%c0, %c0_1] : memref<16x128xf32, #tpu.memory_space<vmem>>, vector<16x128xf32>
    %c0_2 = arith.constant 0 : index
    %c0_3 = arith.constant 0 : index
    %4 = vector.load %arg3[%c0_2, %c0_3] : memref<16x32xf32, #tpu.memory_space<vmem>>, vector<16x32xf32>
    %c0_4 = arith.constant 0 : index
    %c0_5 = arith.constant 0 : index
    %5 = vector.load %arg4[%c0_4, %c0_5] : memref<32x128xbf16, #tpu.memory_space<vmem>>, vector<32x128xbf16>
    %6 = arith.truncf %4 : vector<16x32xf32> to vector<16x32xbf16>
    %cst = arith.constant dense<0.000000e+00> : vector<16x128xf32>
    %7 = tpu.matmul %6, %5, %cst {dimension_numbers = #tpu.dot_dimension_numbers<[1], [0], [0], [1], [0, 0, 1, 1], [], []>} : vector<16x32xbf16>, vector<32x128xbf16>, vector<16x128xf32> -> vector<16x128xf32>
    %8 = arith.addf %3, %7 : vector<16x128xf32>
    %c0_6 = arith.constant 0 : index
    %c0_7 = arith.constant 0 : index
    %9 = vector.load %arg7[%c0_6, %c0_7] : memref<16x128xf32, #tpu.memory_space<vmem>>, vector<16x128xf32>
    tpu.vector_store %arg7[%c0_6, %c0_7], %8 {strides = array<i32>} : memref<16x128xf32, #tpu.memory_space<vmem>>, vector<16x128xf32>,
    %c0_i32_8 = arith.constant 0 : i32
    %10 = arith.cmpi eq, %arg2, %c0_i32_8 : i32
    %11 = arith.extui %10 : i1 to i32
    %c0_i32_9 = arith.constant 0 : i32
    %12 = arith.cmpi ne, %11, %c0_i32_9 : i32
    scf.if %12 {
      %c0_10 = arith.constant 0 : index
      %c0_11 = arith.constant 0 : index
      %13 = vector.load %arg7[%c0_10, %c0_11] : memref<16x128xf32, #tpu.memory_space<vmem>>, vector<16x128xf32>
      %c0_12 = arith.constant 0 : index
      %c0_13 = arith.constant 0 : index
      %14 = vector.load %arg5[%c0_12, %c0_13] : memref<1x128xf32, #tpu.memory_space<vmem>>, vector<1x128xf32>
      %15 = vector.broadcast %14 : vector<1x128xf32> to vector<16x128xf32>
      %16 = arith.addf %13, %15 : vector<16x128xf32>
      %c0_14 = arith.constant 0 : index
      %c0_15 = arith.constant 0 : index
      %17 = vector.load %arg6[%c0_14, %c0_15] : memref<16x128xf32, #tpu.memory_space<vmem>>, vector<16x128xf32>
      tpu.vector_store %arg6[%c0_14, %c0_15], %16 {strides = array<i32>} : memref<16x128xf32, #tpu.memory_space<vmem>>, vector<16x128xf32>,
    } else {
    }
    return
  }
  func.func @transform_0(%arg0: i32, %arg1: i32, %arg2: i32) -> (i32, i32) {
    %c0_i32 = arith.constant 0 : i32
    return %arg0, %arg2 : i32, i32
  }
  func.func @transform_1(%arg0: i32, %arg1: i32, %arg2: i32) -> (i32, i32) {
    %c0_i32 = arith.constant 0 : i32
    return %arg2, %arg1 : i32, i32
  }
  func.func @transform_2(%arg0: i32, %arg1: i32, %arg2: i32) -> (i32, i32) {
    %c0_i32 = arith.constant 0 : i32
    %c0_i32_0 = arith.constant 0 : i32
    return %c0_i32, %arg1 : i32, i32
  }
  func.func @transform_3(%arg0: i32, %arg1: i32, %arg2: i32) -> (i32, i32) {
    %c0_i32 = arith.constant 0 : i32
    return %arg0, %arg1 : i32, i32
  }
}

</mosaic_0001>

<llo_original>
// kernel: attention_model_forward.5
$region0: #{attention_model_forward.5}
  #allocation0 [shape = 'u32[]', space=smem, size = 0x4, offset = 0x4, fixed_abs, tag = 'smem constant byte address 0x4 - core index']
  #allocation1 [shape = 'u32[144,128]{1,0:T(1,128)}', space=vmem, size = 0x12000, scoped, tag = 'internal scratch']
  #allocation2 [shape = 'f32[16,128]{1,0:T(8,128)}', space=vmem, size = 0x2000, scoped, tag = 'scratch operand']
  %s0 = inlined_call_operand.vmem [shape: f32[16,32], index: 0, kind: input, shape index: {}]
  %s1 = inlined_call_operand.vmem [shape: bf16[32,128], index: 1, kind: input, shape index: {}]
  %s2 = inlined_call_operand.vmem [shape: f32[1,128], index: 2, kind: input, shape index: {}]
  %s3 = inlined_call_operand.vmem [shape: f32[16,128], index: 3, kind: output, shape index: {}]
  %s4 = sld [smem:[#allocation0]]
  $region30: #{attention_model_forward.5} parent=0
    _
  %s6 = ssub.s32 1, %s4
  %s7 = scalar_select 0, %s6, %s4
  // Predicated region
  $region2: #{attention_model_forward.5} parent=0 // pred_check
    _
  $region3: #{attention_model_forward.5} parent=0 // pred_check_branch
    %9 = sbr.rel (0) target = $region5
  $region4: #{attention_model_forward.5} parent=0 // pred_region
    _
  $region5: #{attention_model_forward.5} parent=0 // pred_fallthru
    _
  // Predicated region
  $region6: #{attention_model_forward.5} parent=0 // pred_check
    _
  $region7: #{attention_model_forward.5} parent=0 // pred_check_branch
    %11 = sbr.rel (0) target = $region9
  $region8: #{attention_model_forward.5} parent=0 // pred_region
    _
  $region9: #{attention_model_forward.5} parent=0 // pred_fallthru
    _
  // Predicated region
  $region10: #{attention_model_forward.5} parent=0 // pred_check
    _
  $region11: #{attention_model_forward.5} parent=0 // pred_check_branch
    %13 = sbr.rel (0) target = $region13
  $region12: #{attention_model_forward.5} parent=0 // pred_region
    _
  $region13: #{attention_model_forward.5} parent=0 // pred_fallthru
    _
  %p15 = scmp.eq.s32.totalorder 0, 0
  // Predicated region
  $region14: #{attention_model_forward.5} parent=0 // pred_check
    %p16 = pneg %p15
  $region15: #{attention_model_forward.5} parent=0 // pred_check_branch
    %18 = sbr.rel (%p16) target = $region17
  $region16: #{attention_model_forward.5} parent=0 // pred_region
    %19 = vst [vmem:[#allocation2] sm:$0xff] 0.0
    %20 = vst [vmem:[#allocation2 + $0x8] sm:$0xff] 0.0
  $region17: #{attention_model_forward.5} parent=0 // pred_fallthru
    _
  %v21 = vld [vmem:[#allocation2] sm:$0xff]
  %v22 = vld [vmem:[#allocation2 + $0x8] sm:$0xff]
  %v23 = vld [vmem:[%s0] sm:$0xff]
  %v24 = vld [vmem:[%s0 + $0x8] sm:$0xff]
  %v25 = vld [vmem:[%s1] sm:$0xf]
  %v26 = vld [vmem:[%s1 + $0x4] sm:$0xf]
  %v27 = vld [vmem:[%s1 + $0x8] sm:$0xf]
  %v28 = vld [vmem:[%s1 + $0xc] sm:$0xf]
  %v29 = vpack.c.bf16 %v24, %v23
  %v34 = vunpack.c.l.b16 %v25
  %v35 = vunpack.c.l.b16 %v26
  %v36 = vunpack.c.l.b16 %v27
  %v37 = vunpack.c.l.b16 %v28
  %v38 = vpack.c.b16 %v35, %v34
  %v39 = vpack.c.b16 %v37, %v36
  %vm42 = vcmask 261120
  %v44 = vsel %vm42, %v29, 0
  %46 = vmatprep.subr.bf16.mxu0 0
  %47 = vmatpush1.bf16.msra.mxu0 %v38
  %48 = vmatprep.subr.bf16.mxu0 0
  %49 = vmatpush1.bf16.msra.mxu0 %v39
  %50 = vmatprep.subr.bf16.mxu0 0
  %51 = vmatpush1.bf16.msra.mxu0 0
  %52 = vmatprep.subr.bf16.mxu0 0
  %53 = vmatpush1.bf16.msra.mxu0 0
  %54 = vmatprep.subr.bf16.mxu0 0
  %55 = vmatpush1.bf16.msra.mxu0 0
  %56 = vmatprep.subr.bf16.mxu0 0
  %57 = vmatpush1.bf16.msra.mxu0 0
  %58 = vmatprep.subr.bf16.mxu0 0
  %59 = vmatpush1.bf16.msra.mxu0 0
  %60 = vmatprep.subr.bf16.mxu0 0
  %61 = vmatpush1.bf16.msra.mxu0 0
  %62 = vmatprep.subr.bf16.mxu0 0
  %63 = vmatpush1.bf16.msra.mxu0 0
  %64 = vmatprep.subr.bf16.mxu0 0
  %65 = vmatpush1.bf16.msra.mxu0 0
  %66 = vmatprep.subr.bf16.mxu0 0
  %67 = vmatpush1.bf16.msra.mxu0 0
  %68 = vmatprep.subr.bf16.mxu0 0
  %69 = vmatpush1.bf16.msra.mxu0 0
  %70 = vmatprep.subr.bf16.mxu0 0
  %71 = vmatpush1.bf16.msra.mxu0 0
  %72 = vmatprep.subr.bf16.mxu0 0
  %73 = vmatpush1.bf16.msra.mxu0 0
  %74 = vmatprep.subr.bf16.mxu0 0
  %75 = vmatpush1.bf16.msra.mxu0 0
  %76 = vmatprep.subr.bf16.mxu0 0
  %77 = vmatpush1.bf16.msra.mxu0 0
  %78 = vmatprep.mubr.bf16.mxu0 0
  %79 = vmatmul.mubr.bf16.gmra.mrb[0].mxu0 %v44
  %v80 = vpop.f32.mrb[0].mxu0
  %v81 = vadd.f32 0.0, %v80
  %v82 = vpop.f32.mrb[0].mxu0
  %v83 = vpop.f32.mrb[0].mxu0
  %v84 = vadd.f32 0.0, %v83
  %v85 = vpop.f32.mrb[0].mxu0
  %86 = vdwg.mxu0
  %v87 = vadd.f32 %v21, %v81
  %v88 = vadd.f32 %v22, %v84
  %89 = vst [vmem:[#allocation2] sm:$0xff] %v87
  %90 = vst [vmem:[#allocation2 + $0x8] sm:$0xff] %v88
  // Predicated region
  $region18: #{attention_model_forward.5} parent=0 // pred_check
    %p91 = pneg %p15
  $region19: #{attention_model_forward.5} parent=0 // pred_check_branch
    %93 = sbr.rel (%p91) target = $region21
  $region20: #{attention_model_forward.5} parent=0 // pred_region
    %v94 = vld [vmem:[#allocation2] sm:$0xff]
    %v95 = vld [vmem:[#allocation2 + $0x8] sm:$0xff]
    %v96 = vld [vmem:[%s2] sm:$0x1]
    %v98 = vlaneseq
    %v99 = vshrl.u32 %v98, 7
    %v100 = vsub.s32 0, %v99
    %v101 = vrot.slane %v96, %v100
    %v103 = vadd.f32 %v94, %v101
    %v104 = vadd.f32 %v95, %v101
    %105 = vst [vmem:[%s3] sm:$0xff] %v103
    %106 = vst [vmem:[%s3 + $0x8] sm:$0xff] %v104
  $region21: #{attention_model_forward.5} parent=0 // pred_fallthru
    _
  // Predicated region
  $region22: #{attention_model_forward.5} parent=0 // pred_check
    _
  $region23: #{attention_model_forward.5} parent=0 // pred_check_branch
    %108 = sbr.rel (0) target = $region25
  $region24: #{attention_model_forward.5} parent=0 // pred_region
    _
  $region25: #{attention_model_forward.5} parent=0 // pred_fallthru
    _
  // Predicated region
  $region26: #{attention_model_forward.5} parent=0 // pred_check
    _
  $region27: #{attention_model_forward.5} parent=0 // pred_check_branch
    %110 = sbr.rel (0) target = $region29
  $region28: #{attention_model_forward.5} parent=0 // pred_region
    _
  $region29: #{attention_model_forward.5} parent=0 // pred_fallthru
    _

// kernel: attention_model_forward.3
$region0: #{attention_model_forward.3}
  #allocation0 [shape = 'u32[]', space=smem, size = 0x4, offset = 0x4, fixed_abs, tag = 'smem constant byte address 0x4 - core index']
  #allocation1 [shape = 'u32[144,128]{1,0:T(1,128)}', space=vmem, size = 0x12000, scoped, tag = 'internal scratch']
  #allocation2 [shape = 'f32[16,32]{1,0:T(8,128)}', space=vmem, size = 0x2000, scoped, tag = 'scratch operand']
  %s0 = inlined_call_operand.vmem [shape: f32[16,32], index: 0, kind: input, shape index: {}]
  %s1 = inlined_call_operand.vmem [shape: f32[1,32], index: 1, kind: input, shape index: {}]
  %s2 = inlined_call_operand.vmem [shape: f32[1,32], index: 2, kind: input, shape index: {}]
  %s3 = inlined_call_operand.vmem [shape: bf16[32,96], index: 3, kind: input, shape index: {}]
  %s4 = inlined_call_operand.vmem [shape: f32[1,96], index: 4, kind: input, shape index: {}]
  %s5 = inlined_call_operand.vmem [shape: bf16[32,32], index: 5, kind: input, shape index: {}]
  %s6 = inlined_call_operand.vmem [shape: f32[1,32], index: 6, kind: input, shape index: {}]
  %s7 = inlined_call_operand.vmem [shape: f32[1,32], index: 7, kind: input, shape index: {}]
  %s8 = inlined_call_operand.vmem [shape: f32[1,32], index: 8, kind: input, shape index: {}]
  %s9 = inlined_call_operand.vmem [shape: bf16[32,64], index: 9, kind: input, shape index: {}]
  %s10 = inlined_call_operand.vmem [shape: f32[1,64], index: 10, kind: input, shape index: {}]
  %s11 = inlined_call_operand.vmem [shape: bf16[64,32], index: 11, kind: input, shape index: {}]
  %s12 = inlined_call_operand.vmem [shape: f32[1,32], index: 12, kind: input, shape index: {}]
  %s13 = inlined_call_operand.vmem [shape: f32[16,32], index: 13, kind: output, shape index: {}]
  %s14 = sld [smem:[#allocation0]]
  $region62: #{attention_model_forward.3} parent=0
    _
  %s16 = ssub.s32 1, %s14
  %s17 = scalar_select 0, %s16, %s14
  // Predicated region
  $region2: #{attention_model_forward.3} parent=0 // pred_check
    _
  $region3: #{attention_model_forward.3} parent=0 // pred_check_branch
    %19 = sbr.rel (0) target = $region5
  $region4: #{attention_model_forward.3} parent=0 // pred_region
    _
  $region5: #{attention_model_forward.3} parent=0 // pred_fallthru
    _
  // Predicated region
  $region6: #{attention_model_forward.3} parent=0 // pred_check
    _
  $region7: #{attention_model_forward.3} parent=0 // pred_check_branch
    %21 = sbr.rel (0) target = $region9
  $region8: #{attention_model_forward.3} parent=0 // pred_region
    _
  $region9: #{attention_model_forward.3} parent=0 // pred_fallthru
    _
  // Predicated region
  $region10: #{attention_model_forward.3} parent=0 // pred_check
    _
  $region11: #{attention_model_forward.3} parent=0 // pred_check_branch
    %23 = sbr.rel (0) target = $region13
  $region12: #{attention_model_forward.3} parent=0 // pred_region
    _
  $region13: #{attention_model_forward.3} parent=0 // pred_fallthru
    _
  // Predicated region
  $region14: #{attention_model_forward.3} parent=0 // pred_check
    _
  $region15: #{attention_model_forward.3} parent=0 // pred_check_branch
    %25 = sbr.rel (0) target = $region17
  $region16: #{attention_model_forward.3} parent=0 // pred_region
    _
  $region17: #{attention_model_forward.3} parent=0 // pred_fallthru
    _
  // Predicated region
  $region18: #{attention_model_forward.3} parent=0 // pred_check
    _
  $region19: #{attention_model_forward.3} parent=0 // pred_check_branch
    %27 = sbr.rel (0) target = $region21
  $region20: #{attention_model_forward.3} parent=0 // pred_region
    _
  $region21: #{attention_model_forward.3} parent=0 // pred_fallthru
    _
  // Predicated region
  $region22: #{attention_model_forward.3} parent=0 // pred_check
    _
  $region23: #{attention_model_forward.3} parent=0 // pred_check_branch
    %29 = sbr.rel (0) target = $region25
  $region24: #{attention_model_forward.3} parent=0 // pred_region
    _
  $region25: #{attention_model_forward.3} parent=0 // pred_fallthru
    _
  // Predicated region
  $region26: #{attention_model_forward.3} parent=0 // pred_check
    _
  $region27: #{attention_model_forward.3} parent=0 // pred_check_branch
    %31 = sbr.rel (0) target = $region29
  $region28: #{attention_model_forward.3} parent=0 // pred_region
    _
  $region29: #{attention_model_forward.3} parent=0 // pred_fallthru
    _
  // Predicated region
  $region30: #{attention_model_forward.3} parent=0 // pred_check
    _
  $region31: #{attention_model_forward.3} parent=0 // pred_check_branch
    %33 = sbr.rel (0) target = $region33
  $region32: #{attention_model_forward.3} parent=0 // pred_region
    _
  $region33: #{attention_model_forward.3} parent=0 // pred_fallthru
    _
  // Predicated region
  $region34: #{attention_model_forward.3} parent=0 // pred_check
    _
  $region35: #{attention_model_forward.3} parent=0 // pred_check_branch
    %35 = sbr.rel (0) target = $region37
  $region36: #{attention_model_forward.3} parent=0 // pred_region
    _
  $region37: #{attention_model_forward.3} parent=0 // pred_fallthru
    _
  // Predicated region
  $region38: #{attention_model_forward.3} parent=0 // pred_check
    _
  $region39: #{attention_model_forward.3} parent=0 // pred_check_branch
    %37 = sbr.rel (0) target = $region41
  $region40: #{attention_model_forward.3} parent=0 // pred_region
    _
  $region41: #{attention_model_forward.3} parent=0 // pred_fallthru
    _
  // Predicated region
  $region42: #{attention_model_forward.3} parent=0 // pred_check
    _
  $region43: #{attention_model_forward.3} parent=0 // pred_check_branch
    %39 = sbr.rel (0) target = $region45
  $region44: #{attention_model_forward.3} parent=0 // pred_region
    _
  $region45: #{attention_model_forward.3} parent=0 // pred_fallthru
    _
  // Predicated region
  $region46: #{attention_model_forward.3} parent=0 // pred_check
    _
  $region47: #{attention_model_forward.3} parent=0 // pred_check_branch
    %41 = sbr.rel (0) target = $region49
  $region48: #{attention_model_forward.3} parent=0 // pred_region
    _
  $region49: #{attention_model_forward.3} parent=0 // pred_fallthru
    _
  // Predicated region
  $region50: #{attention_model_forward.3} parent=0 // pred_check
    _
  $region51: #{attention_model_forward.3} parent=0 // pred_check_branch
    %43 = sbr.rel (0) target = $region53
  $region52: #{attention_model_forward.3} parent=0 // pred_region
    _
  $region53: #{attention_model_forward.3} parent=0 // pred_fallthru
    _
  %v45 = vld [vmem:[%s0] sm:$0xff]
  %v46 = vld [vmem:[%s0 + $0x8] sm:$0xff]
  %v47 = vld [vmem:[%s1] sm:$0x1]
  %v48 = vld [vmem:[%s2] sm:$0x1]
  %vm49 = vcmask 261120
  %v50 = vsel %vm49, %v45, 0.0
  %51 = vadd.xlane.f32.xlu0 %v50
  %v52 = vpop.xlane.xlu0 %51
  %v53 = vsel %vm49, %v46, 0.0
  %54 = vadd.xlane.f32.xlu0 %v53
  %v55 = vpop.xlane.xlu0 %54
  %v56 = vrcp.pop 32.0
  %v57 = vmul.f32 %v52, %v56
  %v58 = vmul.f32 %v55, %v56
  %v59 = vsub.f32 %v45, %v57
  %v60 = vsub.f32 %v46, %v58
  %v61 = vmul.f32 %v59, %v59
  %v62 = vmul.f32 %v60, %v60
  %v63 = vsel %vm49, %v61, 0.0
  %64 = vadd.xlane.f32.xlu0 %v63
  %v65 = vpop.xlane.xlu0 %64
  %v66 = vsel %vm49, %v62, 0.0
  %67 = vadd.xlane.f32.xlu0 %v66
  %v68 = vpop.xlane.xlu0 %67
  %v69 = vmul.f32 %v65, %v56
  %v70 = vmul.f32 %v68, %v56
  %v71 = vadd.f32 %v69, 1e-05
  %v72 = vadd.f32 %v70, 1e-05
  %v73 = vrsqrt.pop %v71
  %v74 = vrsqrt.pop %v72
  %v75 = vmul.f32 %v59, %v73
  %v76 = vmul.f32 %v60, %v74
  %v78 = vlaneseq
  %v79 = vshrl.u32 %v78, 7
  %v80 = vsub.s32 0, %v79
  %v81 = vrot.slane %v47, %v80
  %v83 = vmul.f32 %v75, %v81
  %v84 = vmul.f32 %v76, %v81
  %v86 = vlaneseq
  %v87 = vshrl.u32 %v86, 7
  %v88 = vsub.s32 0, %v87
  %v89 = vrot.slane %v48, %v88
  %v91 = vadd.f32 %v83, %v89
  %v92 = vadd.f32 %v84, %v89
  %v93 = vld [vmem:[%s3] sm:$0xf]
  %v94 = vld [vmem:[%s3 + $0x4] sm:$0xf]
  %v95 = vld [vmem:[%s3 + $0x8] sm:$0xf]
  %v96 = vld [vmem:[%s3 + $0xc] sm:$0xf]
  %v97 = vpack.c.bf16 %v92, %v91
  %v98 = vld [vmem:[%s4] sm:$0x1]
  %v100 = vlaneseq
  %v101 = vshrl.u32 %v100, 7
  %v102 = vsub.s32 0, %v101
  %v103 = vrot.slane %v98, %v102
  %v109 = vunpack.c.l.b16 %v93
  %v110 = vunpack.c.l.b16 %v94
  %v111 = vunpack.c.l.b16 %v95
  %v112 = vunpack.c.l.b16 %v96
  %v113 = vpack.c.b16 %v110, %v109
  %v114 = vpack.c.b16 %v112, %v111
  %v118 = vsel %vm49, %v97, 0
  %120 = vmatprep.subr.bf16.mxu0 0
  %121 = vmatpush1.bf16.msra.mxu0 %v113
  %122 = vmatprep.subr.bf16.mxu0 0
  %123 = vmatpush1.bf16.msra.mxu0 %v114
  %124 = vmatprep.subr.bf16.mxu0 0
  %125 = vmatpush1.bf16.msra.mxu0 0
  %126 = vmatprep.subr.bf16.mxu0 0
  %127 = vmatpush1.bf16.msra.mxu0 0
  %128 = vmatprep.subr.bf16.mxu0 0
  %129 = vmatpush1.bf16.msra.mxu0 0
  %130 = vmatprep.subr.bf16.mxu0 0
  %131 = vmatpush1.bf16.msra.mxu0 0
  %132 = vmatprep.subr.bf16.mxu0 0
  %133 = vmatpush1.bf16.msra.mxu0 0
  %134 = vmatprep.subr.bf16.mxu0 0
  %135 = vmatpush1.bf16.msra.mxu0 0
  %136 = vmatprep.subr.bf16.mxu0 0
  %137 = vmatpush1.bf16.msra.mxu0 0
  %138 = vmatprep.subr.bf16.mxu0 0
  %139 = vmatpush1.bf16.msra.mxu0 0
  %140 = vmatprep.subr.bf16.mxu0 0
  %141 = vmatpush1.bf16.msra.mxu0 0
  %142 = vmatprep.subr.bf16.mxu0 0
  %143 = vmatpush1.bf16.msra.mxu0 0
  %144 = vmatprep.subr.bf16.mxu0 0
  %145 = vmatpush1.bf16.msra.mxu0 0
  %146 = vmatprep.subr.bf16.mxu0 0
  %147 = vmatpush1.bf16.msra.mxu0 0
  %148 = vmatprep.subr.bf16.mxu0 0
  %149 = vmatpush1.bf16.msra.mxu0 0
  %150 = vmatprep.subr.bf16.mxu0 0
  %151 = vmatpush1.bf16.msra.mxu0 0
  %152 = vmatprep.mubr.bf16.mxu0 0
  %153 = vmatmul.mubr.bf16.gmra.mrb[0].mxu0 %v118
  %v154 = vpop.f32.mrb[0].mxu0
  %v155 = vadd.f32 %v103, %v154
  %v156 = vpop.f32.mrb[0].mxu0
  %v157 = vpop.f32.mrb[0].mxu0
  %v158 = vadd.f32 %v103, %v157
  %v159 = vpop.f32.mrb[0].mxu0
  %160 = vdwg.mxu0
  %v161 = vlaneseq
  %v162 = vshrl.u32 %v161, 7
  %v163 = vlaneseq
  %v164 = vand.u32 %v163, 127
  %vm165 = vcmp.gt.s32.totalorder %v164, %v162
  %v166 = vsel %vm165, -1e+30, 0.0
  %v167 = vpack.c.bf16 %v155, %v155
  %169 = vrot.lane.b32.xlu0 %v167, 96
  %v170 = vpop.permute.xlu0 %169
  %vm171 = vcmask 64512
  %v173 = vsel %vm171, %v167, 0
  %v176 = vsel %vm171, %v170, 0
  %178 = vmatprep.subr.bf16.mxu0 0
  %179 = vmatpush1.bf16.xpose.msra.mxu0 %v176
  %180 = vmatprep.subr.bf16.mxu0 0
  %181 = vmatpush1.bf16.xpose.msra.mxu0 0
  %182 = vmatprep.subr.bf16.mxu0 0
  %183 = vmatpush1.bf16.xpose.msra.mxu0 0
  %184 = vmatprep.subr.bf16.mxu0 0
  %185 = vmatpush1.bf16.xpose.msra.mxu0 0
  %186 = vmatprep.subr.bf16.mxu0 0
  %187 = vmatpush1.bf16.xpose.msra.mxu0 0
  %188 = vmatprep.subr.bf16.mxu0 0
  %189 = vmatpush1.bf16.xpose.msra.mxu0 0
  %190 = vmatprep.subr.bf16.mxu0 0
  %191 = vmatpush1.bf16.xpose.msra.mxu0 0
  %192 = vmatprep.subr.bf16.mxu0 0
  %193 = vmatpush1.bf16.xpose.msra.mxu0 0
  %194 = vmatprep.subr.bf16.mxu0 0
  %195 = vmatpush1.bf16.xpose.msra.mxu0 0
  %196 = vmatprep.subr.bf16.mxu0 0
  %197 = vmatpush1.bf16.xpose.msra.mxu0 0
  %198 = vmatprep.subr.bf16.mxu0 0
  %199 = vmatpush1.bf16.xpose.msra.mxu0 0
  %200 = vmatprep.subr.bf16.mxu0 0
  %201 = vmatpush1.bf16.xpose.msra.mxu0 0
  %202 = vmatprep.subr.bf16.mxu0 0
  %203 = vmatpush1.bf16.xpose.msra.mxu0 0
  %204 = vmatprep.subr.bf16.mxu0 0
  %205 = vmatpush1.bf16.xpose.msra.mxu0 0
  %206 = vmatprep.subr.bf16.mxu0 0
  %207 = vmatpush1.bf16.xpose.msra.mxu0 0
  %208 = vmatprep.subr.bf16.mxu0 0
  %209 = vmatpush1.bf16.xpose.msra.mxu0 0
  %210 = vmatprep.mubr.bf16.mxu0 0
  %211 = vmatmul.mubr.bf16.gmra.mrb[0].mxu0 %v173
  %v212 = vpop.f32.mrb[0].mxu0
  %v213 = vadd.f32 0.0, %v212
  %v214 = vpop.f32.mrb[0].mxu0
  %v215 = vpop.f32.mrb[0].mxu0
  %v216 = vpop.f32.mrb[0].mxu0
  %217 = vdwg.mxu0
  %v218 = vmul.f32 %v213, 0.17677669
  %v219 = vadd.f32 %v218, %v166
  %v220 = vsel %vm171, %v219, -inf
  %221 = vmax.xlane.f32.xlu0 %v220
  %v222 = vpop.xlane.xlu0 %221
  %v223 = vsub.f32 %v219, %v222
  %v224 = vmul.f32 %v223, 1.442695
  %v225 = vpow.pop %v224
  %v226 = vsel %vm171, %v225, 0.0
  %227 = vadd.xlane.f32.xlu0 %v226
  %v228 = vpop.xlane.xlu0 %227
  %v229 = vrcp.pop %v228
  %v230 = vmul.f32 %v225, %v229
  %v231 = vpack.c.bf16 %v230, %v230
  %232 = vrot.lane.b32.xlu0 %v167, 64
  %v233 = vpop.permute.xlu0 %232
  %v235 = vsel %vm171, %v231, 0
  %vm237 = vcmask 1043456
  %v239 = vsel %vm237, %v233, 0
  %241 = vmatprep.subr.bf16.mxu0 0
  %242 = vmatpush1.bf16.msra.mxu0 %v239
  %243 = vmatprep.subr.bf16.mxu0 0
  %244 = vmatpush1.bf16.msra.mxu0 0
  %245 = vmatprep.subr.bf16.mxu0 0
  %246 = vmatpush1.bf16.msra.mxu0 0
  %247 = vmatprep.subr.bf16.mxu0 0
  %248 = vmatpush1.bf16.msra.mxu0 0
  %249 = vmatprep.subr.bf16.mxu0 0
  %250 = vmatpush1.bf16.msra.mxu0 0
  %251 = vmatprep.subr.bf16.mxu0 0
  %252 = vmatpush1.bf16.msra.mxu0 0
  %253 = vmatprep.subr.bf16.mxu0 0
  %254 = vmatpush1.bf16.msra.mxu0 0
  %255 = vmatprep.subr.bf16.mxu0 0
  %256 = vmatpush1.bf16.msra.mxu0 0
  %257 = vmatprep.subr.bf16.mxu0 0
  %258 = vmatpush1.bf16.msra.mxu0 0
  %259 = vmatprep.subr.bf16.mxu0 0
  %260 = vmatpush1.bf16.msra.mxu0 0
  %261 = vmatprep.subr.bf16.mxu0 0
  %262 = vmatpush1.bf16.msra.mxu0 0
  %263 = vmatprep.subr.bf16.mxu0 0
  %264 = vmatpush1.bf16.msra.mxu0 0
  %265 = vmatprep.subr.bf16.mxu0 0
  %266 = vmatpush1.bf16.msra.mxu0 0
  %267 = vmatprep.subr.bf16.mxu0 0
  %268 = vmatpush1.bf16.msra.mxu0 0
  %269 = vmatprep.subr.bf16.mxu0 0
  %270 = vmatpush1.bf16.msra.mxu0 0
  %271 = vmatprep.subr.bf16.mxu0 0
  %272 = vmatpush1.bf16.msra.mxu0 0
  %273 = vmatprep.mubr.bf16.mxu0 0
  %274 = vmatmul.mubr.bf16.gmra.mrb[0].mxu0 %v235
  %v275 = vpop.f32.mrb[0].mxu0
  %v276 = vadd.f32 0.0, %v275
  %v277 = vpop.f32.mrb[0].mxu0
  %v278 = vpop.f32.mrb[0].mxu0
  %v279 = vpop.f32.mrb[0].mxu0
  %280 = vdwg.mxu0
  %281 = vst.msk [vmem:[#allocation2] sm:$0xff] %vm171, %v276
  %282 = vrot.lane.b32.xlu0 %v167, 120
  %v283 = vpop.permute.xlu0 %282
  %284 = vrot.lane.b32.xlu0 %v167, 88
  %v285 = vpop.permute.xlu0 %284
  %v287 = vsel %vm171, %v283, 0
  %v290 = vsel %vm171, %v285, 0
  %292 = vmatprep.subr.bf16.mxu0 0
  %293 = vmatpush1.bf16.xpose.msra.mxu0 %v290
  %294 = vmatprep.subr.bf16.mxu0 0
  %295 = vmatpush1.bf16.xpose.msra.mxu0 0
  %296 = vmatprep.subr.bf16.mxu0 0
  %297 = vmatpush1.bf16.xpose.msra.mxu0 0
  %298 = vmatprep.subr.bf16.mxu0 0
  %299 = vmatpush1.bf16.xpose.msra.mxu0 0
  %300 = vmatprep.subr.bf16.mxu0 0
  %301 = vmatpush1.bf16.xpose.msra.mxu0 0
  %302 = vmatprep.subr.bf16.mxu0 0
  %303 = vmatpush1.bf16.xpose.msra.mxu0 0
  %304 = vmatprep.subr.bf16.mxu0 0
  %305 = vmatpush1.bf16.xpose.msra.mxu0 0
  %306 = vmatprep.subr.bf16.mxu0 0
  %307 = vmatpush1.bf16.xpose.msra.mxu0 0
  %308 = vmatprep.subr.bf16.mxu0 0
  %309 = vmatpush1.bf16.xpose.msra.mxu0 0
  %310 = vmatprep.subr.bf16.mxu0 0
  %311 = vmatpush1.bf16.xpose.msra.mxu0 0
  %312 = vmatprep.subr.bf16.mxu0 0
  %313 = vmatpush1.bf16.xpose.msra.mxu0 0
  %314 = vmatprep.subr.bf16.mxu0 0
  %315 = vmatpush1.bf16.xpose.msra.mxu0 0
  %316 = vmatprep.subr.bf16.mxu0 0
  %317 = vmatpush1.bf16.xpose.msra.mxu0 0
  %318 = vmatprep.subr.bf16.mxu0 0
  %319 = vmatpush1.bf16.xpose.msra.mxu0 0
  %320 = vmatprep.subr.bf16.mxu0 0
  %321 = vmatpush1.bf16.xpose.msra.mxu0 0
  %322 = vmatprep.subr.bf16.mxu0 0
  %323 = vmatpush1.bf16.xpose.msra.mxu0 0
  %324 = vmatprep.mubr.bf16.mxu0 0
  %325 = vmatmul.mubr.bf16.gmra.mrb[0].mxu0 %v287
  %v326 = vpop.f32.mrb[0].mxu0
  %v327 = vadd.f32 0.0, %v326
  %v328 = vpop.f32.mrb[0].mxu0
  %v329 = vpop.f32.mrb[0].mxu0
  %v330 = vpop.f32.mrb[0].mxu0
  %331 = vdwg.mxu0
  %v332 = vmul.f32 %v327, 0.17677669
  %v333 = vadd.f32 %v332, %v166
  %v334 = vsel %vm171, %v333, -inf
  %335 = vmax.xlane.f32.xlu0 %v334
  %v336 = vpop.xlane.xlu0 %335
  %v337 = vsub.f32 %v333, %v336
  %v338 = vmul.f32 %v337, 1.442695
  %v339 = vpow.pop %v338
  %v340 = vsel %vm171, %v339, 0.0
  %341 = vadd.xlane.f32.xlu0 %v340
  %v342 = vpop.xlane.xlu0 %341
  %v343 = vrcp.pop %v342
  %v344 = vmul.f32 %v339, %v343
  %v345 = vpack.c.bf16 %v344, %v344
  %346 = vrot.lane.b32.xlu0 %v167, 56
  %v347 = vpop.permute.xlu0 %346
  %v349 = vsel %vm171, %v345, 0
  %v352 = vsel %vm237, %v347, 0
  %354 = vmatprep.subr.bf16.mxu0 0
  %355 = vmatpush1.bf16.msra.mxu0 %v352
  %356 = vmatprep.subr.bf16.mxu0 0
  %357 = vmatpush1.bf16.msra.mxu0 0
  %358 = vmatprep.subr.bf16.mxu0 0
  %359 = vmatpush1.bf16.msra.mxu0 0
  %360 = vmatprep.subr.bf16.mxu0 0
  %361 = vmatpush1.bf16.msra.mxu0 0
  %362 = vmatprep.subr.bf16.mxu0 0
  %363 = vmatpush1.bf16.msra.mxu0 0
  %364 = vmatprep.subr.bf16.mxu0 0
  %365 = vmatpush1.bf16.msra.mxu0 0
  %366 = vmatprep.subr.bf16.mxu0 0
  %367 = vmatpush1.bf16.msra.mxu0 0
  %368 = vmatprep.subr.bf16.mxu0 0
  %369 = vmatpush1.bf16.msra.mxu0 0
  %370 = vmatprep.subr.bf16.mxu0 0
  %371 = vmatpush1.bf16.msra.mxu0 0
  %372 = vmatprep.subr.bf16.mxu0 0
  %373 = vmatpush1.bf16.msra.mxu0 0
  %374 = vmatprep.subr.bf16.mxu0 0
  %375 = vmatpush1.bf16.msra.mxu0 0
  %376 = vmatprep.subr.bf16.mxu0 0
  %377 = vmatpush1.bf16.msra.mxu0 0
  %378 = vmatprep.subr.bf16.mxu0 0
  %379 = vmatpush1.bf16.msra.mxu0 0
  %380 = vmatprep.subr.bf16.mxu0 0
  %381 = vmatpush1.bf16.msra.mxu0 0
  %382 = vmatprep.subr.bf16.mxu0 0
  %383 = vmatpush1.bf16.msra.mxu0 0
  %384 = vmatprep.subr.bf16.mxu0 0
  %385 = vmatpush1.bf16.msra.mxu0 0
  %386 = vmatprep.mubr.bf16.mxu0 0
  %387 = vmatmul.mubr.bf16.gmra.mrb[0].mxu0 %v349
  %v388 = vpop.f32.mrb[0].mxu0
  %v389 = vadd.f32 0.0, %v388
  %v390 = vpop.f32.mrb[0].mxu0
  %v391 = vpop.f32.mrb[0].mxu0
  %v392 = vpop.f32.mrb[0].mxu0
  %393 = vdwg.mxu0
  %395 = vrot.lane.b32.xlu0 %v389, 8
  %v396 = vpop.permute.xlu0 %395
  %vm398 = vcmask 130112
  %399 = vst.msk [vmem:[#allocation2] sm:$0xff] %vm398, %v396
  %400 = vrot.lane.b32.xlu0 %v167, 112
  %v401 = vpop.permute.xlu0 %400
  %402 = vrot.lane.b32.xlu0 %v167, 80
  %v403 = vpop.permute.xlu0 %402
  %v405 = vsel %vm171, %v401, 0
  %v408 = vsel %vm171, %v403, 0
  %410 = vmatprep.subr.bf16.mxu0 0
  %411 = vmatpush1.bf16.xpose.msra.mxu0 %v408
  %412 = vmatprep.subr.bf16.mxu0 0
  %413 = vmatpush1.bf16.xpose.msra.mxu0 0
  %414 = vmatprep.subr.bf16.mxu0 0
  %415 = vmatpush1.bf16.xpose.msra.mxu0 0
  %416 = vmatprep.subr.bf16.mxu0 0
  %417 = vmatpush1.bf16.xpose.msra.mxu0 0
  %418 = vmatprep.subr.bf16.mxu0 0
  %419 = vmatpush1.bf16.xpose.msra.mxu0 0
  %420 = vmatprep.subr.bf16.mxu0 0
  %421 = vmatpush1.bf16.xpose.msra.mxu0 0
  %422 = vmatprep.subr.bf16.mxu0 0
  %423 = vmatpush1.bf16.xpose.msra.mxu0 0
  %424 = vmatprep.subr.bf16.mxu0 0
  %425 = vmatpush1.bf16.xpose.msra.mxu0 0
  %426 = vmatprep.subr.bf16.mxu0 0
  %427 = vmatpush1.bf16.xpose.msra.mxu0 0
  %428 = vmatprep.subr.bf16.mxu0 0
  %429 = vmatpush1.bf16.xpose.msra.mxu0 0
  %430 = vmatprep.subr.bf16.mxu0 0
  %431 = vmatpush1.bf16.xpose.msra.mxu0 0
  %432 = vmatprep.subr.bf16.mxu0 0
  %433 = vmatpush1.bf16.xpose.msra.mxu0 0
  %434 = vmatprep.subr.bf16.mxu0 0
  %435 = vmatpush1.bf16.xpose.msra.mxu0 0
  %436 = vmatprep.subr.bf16.mxu0 0
  %437 = vmatpush1.bf16.xpose.msra.mxu0 0
  %438 = vmatprep.subr.bf16.mxu0 0
  %439 = vmatpush1.bf16.xpose.msra.mxu0 0
  %440 = vmatprep.subr.bf16.mxu0 0
  %441 = vmatpush1.bf16.xpose.msra.mxu0 0
  %442 = vmatprep.mubr.bf16.mxu0 0
  %443 = vmatmul.mubr.bf16.gmra.mrb[0].mxu0 %v405
  %v444 = vpop.f32.mrb[0].mxu0
  %v445 = vadd.f32 0.0, %v444
  %v446 = vpop.f32.mrb[0].mxu0
  %v447 = vpop.f32.mrb[0].mxu0
  %v448 = vpop.f32.mrb[0].mxu0
  %449 = vdwg.mxu0
  %v450 = vmul.f32 %v445, 0.17677669
  %v451 = vadd.f32 %v450, %v166
  %v452 = vsel %vm171, %v451, -inf
  %453 = vmax.xlane.f32.xlu0 %v452
  %v454 = vpop.xlane.xlu0 %453
  %v455 = vsub.f32 %v451, %v454
  %v456 = vmul.f32 %v455, 1.442695
  %v457 = vpow.pop %v456
  %v458 = vsel %vm171, %v457, 0.0
  %459 = vadd.xlane.f32.xlu0 %v458
  %v460 = vpop.xlane.xlu0 %459
  %v461 = vrcp.pop %v460
  %v462 = vmul.f32 %v457, %v461
  %v463 = vpack.c.bf16 %v462, %v462
  %464 = vrot.lane.b32.xlu0 %v167, 48
  %v465 = vpop.permute.xlu0 %464
  %v467 = vsel %vm171, %v463, 0
  %v470 = vsel %vm237, %v465, 0
  %472 = vmatprep.subr.bf16.mxu0 0
  %473 = vmatpush1.bf16.msra.mxu0 %v470
  %474 = vmatprep.subr.bf16.mxu0 0
  %475 = vmatpush1.bf16.msra.mxu0 0
  %476 = vmatprep.subr.bf16.mxu0 0
  %477 = vmatpush1.bf16.msra.mxu0 0
  %478 = vmatprep.subr.bf16.mxu0 0
  %479 = vmatpush1.bf16.msra.mxu0 0
  %480 = vmatprep.subr.bf16.mxu0 0
  %481 = vmatpush1.bf16.msra.mxu0 0
  %482 = vmatprep.subr.bf16.mxu0 0
  %483 = vmatpush1.bf16.msra.mxu0 0
  %484 = vmatprep.subr.bf16.mxu0 0
  %485 = vmatpush1.bf16.msra.mxu0 0
  %486 = vmatprep.subr.bf16.mxu0 0
  %487 = vmatpush1.bf16.msra.mxu0 0
  %488 = vmatprep.subr.bf16.mxu0 0
  %489 = vmatpush1.bf16.msra.mxu0 0
  %490 = vmatprep.subr.bf16.mxu0 0
  %491 = vmatpush1.bf16.msra.mxu0 0
  %492 = vmatprep.subr.bf16.mxu0 0
  %493 = vmatpush1.bf16.msra.mxu0 0
  %494 = vmatprep.subr.bf16.mxu0 0
  %495 = vmatpush1.bf16.msra.mxu0 0
  %496 = vmatprep.subr.bf16.mxu0 0
  %497 = vmatpush1.bf16.msra.mxu0 0
  %498 = vmatprep.subr.bf16.mxu0 0
  %499 = vmatpush1.bf16.msra.mxu0 0
  %500 = vmatprep.subr.bf16.mxu0 0
  %501 = vmatpush1.bf16.msra.mxu0 0
  %502 = vmatprep.subr.bf16.mxu0 0
  %503 = vmatpush1.bf16.msra.mxu0 0
  %504 = vmatprep.mubr.bf16.mxu0 0
  %505 = vmatmul.mubr.bf16.gmra.mrb[0].mxu0 %v467
  %v506 = vpop.f32.mrb[0].mxu0
  %v507 = vadd.f32 0.0, %v506
  %v508 = vpop.f32.mrb[0].mxu0
  %v509 = vpop.f32.mrb[0].mxu0
  %v510 = vpop.f32.mrb[0].mxu0
  %511 = vdwg.mxu0
  %513 = vrot.lane.b32.xlu0 %v507, 16
  %v514 = vpop.permute.xlu0 %513
  %vm516 = vcmask 195712
  %517 = vst.msk [vmem:[#allocation2] sm:$0xff] %vm516, %v514
  %518 = vrot.lane.b32.xlu0 %v167, 104
  %v519 = vpop.permute.xlu0 %518
  %520 = vrot.lane.b32.xlu0 %v167, 72
  %v521 = vpop.permute.xlu0 %520
  %v523 = vsel %vm171, %v519, 0
  %v526 = vsel %vm171, %v521, 0
  %528 = vmatprep.subr.bf16.mxu0 0
  %529 = vmatpush1.bf16.xpose.msra.mxu0 %v526
  %530 = vmatprep.subr.bf16.mxu0 0
  %531 = vmatpush1.bf16.xpose.msra.mxu0 0
  %532 = vmatprep.subr.bf16.mxu0 0
  %533 = vmatpush1.bf16.xpose.msra.mxu0 0
  %534 = vmatprep.subr.bf16.mxu0 0
  %535 = vmatpush1.bf16.xpose.msra.mxu0 0
  %536 = vmatprep.subr.bf16.mxu0 0
  %537 = vmatpush1.bf16.xpose.msra.mxu0 0
  %538 = vmatprep.subr.bf16.mxu0 0
  %539 = vmatpush1.bf16.xpose.msra.mxu0 0
  %540 = vmatprep.subr.bf16.mxu0 0
  %541 = vmatpush1.bf16.xpose.msra.mxu0 0
  %542 = vmatprep.subr.bf16.mxu0 0
  %543 = vmatpush1.bf16.xpose.msra.mxu0 0
  %544 = vmatprep.subr.bf16.mxu0 0
  %545 = vmatpush1.bf16.xpose.msra.mxu0 0
  %546 = vmatprep.subr.bf16.mxu0 0
  %547 = vmatpush1.bf16.xpose.msra.mxu0 0
  %548 = vmatprep.subr.bf16.mxu0 0
  %549 = vmatpush1.bf16.xpose.msra.mxu0 0
  %550 = vmatprep.subr.bf16.mxu0 0
  %551 = vmatpush1.bf16.xpose.msra.mxu0 0
  %552 = vmatprep.subr.bf16.mxu0 0
  %553 = vmatpush1.bf16.xpose.msra.mxu0 0
  %554 = vmatprep.subr.bf16.mxu0 0
  %555 = vmatpush1.bf16.xpose.msra.mxu0 0
  %556 = vmatprep.subr.bf16.mxu0 0
  %557 = vmatpush1.bf16.xpose.msra.mxu0 0
  %558 = vmatprep.subr.bf16.mxu0 0
  %559 = vmatpush1.bf16.xpose.msra.mxu0 0
  %560 = vmatprep.mubr.bf16.mxu0 0
  %561 = vmatmul.mubr.bf16.gmra.mrb[0].mxu0 %v523
  %v562 = vpop.f32.mrb[0].mxu0
  %v563 = vadd.f32 0.0, %v562
  %v564 = vpop.f32.mrb[0].mxu0
  %v565 = vpop.f32.mrb[0].mxu0
  %v566 = vpop.f32.mrb[0].mxu0
  %567 = vdwg.mxu0
  %v568 = vmul.f32 %v563, 0.17677669
  %v569 = vadd.f32 %v568, %v166
  %v570 = vsel %vm171, %v569, -inf
  %571 = vmax.xlane.f32.xlu0 %v570
  %v572 = vpop.xlane.xlu0 %571
  %v573 = vsub.f32 %v569, %v572
  %v574 = vmul.f32 %v573, 1.442695
  %v575 = vpow.pop %v574
  %v576 = vsel %vm171, %v575, 0.0
  %577 = vadd.xlane.f32.xlu0 %v576
  %v578 = vpop.xlane.xlu0 %577
  %v579 = vrcp.pop %v578
  %v580 = vmul.f32 %v575, %v579
  %v581 = vpack.c.bf16 %v580, %v580
  %582 = vrot.lane.b32.xlu0 %v167, 40
  %v583 = vpop.permute.xlu0 %582
  %v585 = vsel %vm171, %v581, 0
  %v588 = vsel %vm237, %v583, 0
  %590 = vmatprep.subr.bf16.mxu0 0
  %591 = vmatpush1.bf16.msra.mxu0 %v588
  %592 = vmatprep.subr.bf16.mxu0 0
  %593 = vmatpush1.bf16.msra.mxu0 0
  %594 = vmatprep.subr.bf16.mxu0 0
  %595 = vmatpush1.bf16.msra.mxu0 0
  %596 = vmatprep.subr.bf16.mxu0 0
  %597 = vmatpush1.bf16.msra.mxu0 0
  %598 = vmatprep.subr.bf16.mxu0 0
  %599 = vmatpush1.bf16.msra.mxu0 0
  %600 = vmatprep.subr.bf16.mxu0 0
  %601 = vmatpush1.bf16.msra.mxu0 0
  %602 = vmatprep.subr.bf16.mxu0 0
  %603 = vmatpush1.bf16.msra.mxu0 0
  %604 = vmatprep.subr.bf16.mxu0 0
  %605 = vmatpush1.bf16.msra.mxu0 0
  %606 = vmatprep.subr.bf16.mxu0 0
  %607 = vmatpush1.bf16.msra.mxu0 0
  %608 = vmatprep.subr.bf16.mxu0 0
  %609 = vmatpush1.bf16.msra.mxu0 0
  %610 = vmatprep.subr.bf16.mxu0 0
  %611 = vmatpush1.bf16.msra.mxu0 0
  %612 = vmatprep.subr.bf16.mxu0 0
  %613 = vmatpush1.bf16.msra.mxu0 0
  %614 = vmatprep.subr.bf16.mxu0 0
  %615 = vmatpush1.bf16.msra.mxu0 0
  %616 = vmatprep.subr.bf16.mxu0 0
  %617 = vmatpush1.bf16.msra.mxu0 0
  %618 = vmatprep.subr.bf16.mxu0 0
  %619 = vmatpush1.bf16.msra.mxu0 0
  %620 = vmatprep.subr.bf16.mxu0 0
  %621 = vmatpush1.bf16.msra.mxu0 0
  %622 = vmatprep.mubr.bf16.mxu0 0
  %623 = vmatmul.mubr.bf16.gmra.mrb[0].mxu0 %v585
  %v624 = vpop.f32.mrb[0].mxu0
  %v625 = vadd.f32 0.0, %v624
  %v626 = vpop.f32.mrb[0].mxu0
  %v627 = vpop.f32.mrb[0].mxu0
  %v628 = vpop.f32.mrb[0].mxu0
  %629 = vdwg.mxu0
  %631 = vrot.lane.b32.xlu0 %v625, 24
  %v632 = vpop.permute.xlu0 %631
  %vm634 = vcmask 261312
  %635 = vst.msk [vmem:[#allocation2] sm:$0xff] %vm634, %v632
  %v636 = vpack.c.bf16 %v158, %v158
  %638 = vrot.lane.b32.xlu0 %v636, 96
  %v639 = vpop.permute.xlu0 %638
  %v641 = vsel %vm171, %v636, 0
  %v644 = vsel %vm171, %v639, 0
  %646 = vmatprep.subr.bf16.mxu0 0
  %647 = vmatpush1.bf16.xpose.msra.mxu0 %v644
  %648 = vmatprep.subr.bf16.mxu0 0
  %649 = vmatpush1.bf16.xpose.msra.mxu0 0
  %650 = vmatprep.subr.bf16.mxu0 0
  %651 = vmatpush1.bf16.xpose.msra.mxu0 0
  %652 = vmatprep.subr.bf16.mxu0 0
  %653 = vmatpush1.bf16.xpose.msra.mxu0 0
  %654 = vmatprep.subr.bf16.mxu0 0
  %655 = vmatpush1.bf16.xpose.msra.mxu0 0
  %656 = vmatprep.subr.bf16.mxu0 0
  %657 = vmatpush1.bf16.xpose.msra.mxu0 0
  %658 = vmatprep.subr.bf16.mxu0 0
  %659 = vmatpush1.bf16.xpose.msra.mxu0 0
  %660 = vmatprep.subr.bf16.mxu0 0
  %661 = vmatpush1.bf16.xpose.msra.mxu0 0
  %662 = vmatprep.subr.bf16.mxu0 0
  %663 = vmatpush1.bf16.xpose.msra.mxu0 0
  %664 = vmatprep.subr.bf16.mxu0 0
  %665 = vmatpush1.bf16.xpose.msra.mxu0 0
  %666 = vmatprep.subr.bf16.mxu0 0
  %667 = vmatpush1.bf16.xpose.msra.mxu0 0
  %668 = vmatprep.subr.bf16.mxu0 0
  %669 = vmatpush1.bf16.xpose.msra.mxu0 0
  %670 = vmatprep.subr.bf16.mxu0 0
  %671 = vmatpush1.bf16.xpose.msra.mxu0 0
  %672 = vmatprep.subr.bf16.mxu0 0
  %673 = vmatpush1.bf16.xpose.msra.mxu0 0
  %674 = vmatprep.subr.bf16.mxu0 0
  %675 = vmatpush1.bf16.xpose.msra.mxu0 0
  %676 = vmatprep.subr.bf16.mxu0 0
  %677 = vmatpush1.bf16.xpose.msra.mxu0 0
  %678 = vmatprep.mubr.bf16.mxu0 0
  %679 = vmatmul.mubr.bf16.gmra.mrb[0].mxu0 %v641
  %v680 = vpop.f32.mrb[0].mxu0
  %v681 = vadd.f32 0.0, %v680
  %v682 = vpop.f32.mrb[0].mxu0
  %v683 = vpop.f32.mrb[0].mxu0
  %v684 = vpop.f32.mrb[0].mxu0
  %685 = vdwg.mxu0
  %v686 = vmul.f32 %v681, 0.17677669
  %v687 = vadd.f32 %v686, %v166
  %v688 = vsel %vm171, %v687, -inf
  %689 = vmax.xlane.f32.xlu0 %v688
  %v690 = vpop.xlane.xlu0 %689
  %v691 = vsub.f32 %v687, %v690
  %v692 = vmul.f32 %v691, 1.442695
  %v693 = vpow.pop %v692
  %v694 = vsel %vm171, %v693, 0.0
  %695 = vadd.xlane.f32.xlu0 %v694
  %v696 = vpop.xlane.xlu0 %695
  %v697 = vrcp.pop %v696
  %v698 = vmul.f32 %v693, %v697
  %v699 = vpack.c.bf16 %v698, %v698
  %700 = vrot.lane.b32.xlu0 %v636, 64
  %v701 = vpop.permute.xlu0 %700
  %v703 = vsel %vm171, %v699, 0
  %v706 = vsel %vm237, %v701, 0
  %708 = vmatprep.subr.bf16.mxu0 0
  %709 = vmatpush1.bf16.msra.mxu0 %v706
  %710 = vmatprep.subr.bf16.mxu0 0
  %711 = vmatpush1.bf16.msra.mxu0 0
  %712 = vmatprep.subr.bf16.mxu0 0
  %713 = vmatpush1.bf16.msra.mxu0 0
  %714 = vmatprep.subr.bf16.mxu0 0
  %715 = vmatpush1.bf16.msra.mxu0 0
  %716 = vmatprep.subr.bf16.mxu0 0
  %717 = vmatpush1.bf16.msra.mxu0 0
  %718 = vmatprep.subr.bf16.mxu0 0
  %719 = vmatpush1.bf16.msra.mxu0 0
  %720 = vmatprep.subr.bf16.mxu0 0
  %721 = vmatpush1.bf16.msra.mxu0 0
  %722 = vmatprep.subr.bf16.mxu0 0
  %723 = vmatpush1.bf16.msra.mxu0 0
  %724 = vmatprep.subr.bf16.mxu0 0
  %725 = vmatpush1.bf16.msra.mxu0 0
  %726 = vmatprep.subr.bf16.mxu0 0
  %727 = vmatpush1.bf16.msra.mxu0 0
  %728 = vmatprep.subr.bf16.mxu0 0
  %729 = vmatpush1.bf16.msra.mxu0 0
  %730 = vmatprep.subr.bf16.mxu0 0
  %731 = vmatpush1.bf16.msra.mxu0 0
  %732 = vmatprep.subr.bf16.mxu0 0
  %733 = vmatpush1.bf16.msra.mxu0 0
  %734 = vmatprep.subr.bf16.mxu0 0
  %735 = vmatpush1.bf16.msra.mxu0 0
  %736 = vmatprep.subr.bf16.mxu0 0
  %737 = vmatpush1.bf16.msra.mxu0 0
  %738 = vmatprep.subr.bf16.mxu0 0
  %739 = vmatpush1.bf16.msra.mxu0 0
  %740 = vmatprep.mubr.bf16.mxu0 0
  %741 = vmatmul.mubr.bf16.gmra.mrb[0].mxu0 %v703
  %v742 = vpop.f32.mrb[0].mxu0
  %v743 = vadd.f32 0.0, %v742
  %v744 = vpop.f32.mrb[0].mxu0
  %v745 = vpop.f32.mrb[0].mxu0
  %v746 = vpop.f32.mrb[0].mxu0
  %747 = vdwg.mxu0
  %748 = vst.msk [vmem:[#allocation2 + $0x8] sm:$0xff] %vm171, %v743
  %749 = vrot.lane.b32.xlu0 %v636, 120
  %v750 = vpop.permute.xlu0 %749
  %751 = vrot.lane.b32.xlu0 %v636, 88
  %v752 = vpop.permute.xlu0 %751
  %v754 = vsel %vm171, %v750, 0
  %v757 = vsel %vm171, %v752, 0
  %759 = vmatprep.subr.bf16.mxu0 0
  %760 = vmatpush1.bf16.xpose.msra.mxu0 %v757
  %761 = vmatprep.subr.bf16.mxu0 0
  %762 = vmatpush1.bf16.xpose.msra.mxu0 0
  %763 = vmatprep.subr.bf16.mxu0 0
  %764 = vmatpush1.bf16.xpose.msra.mxu0 0
  %765 = vmatprep.subr.bf16.mxu0 0
  %766 = vmatpush1.bf16.xpose.msra.mxu0 0
  %767 = vmatprep.subr.bf16.mxu0 0
  %768 = vmatpush1.bf16.xpose.msra.mxu0 0
  %769 = vmatprep.subr.bf16.mxu0 0
  %770 = vmatpush1.bf16.xpose.msra.mxu0 0
  %771 = vmatprep.subr.bf16.mxu0 0
  %772 = vmatpush1.bf16.xpose.msra.mxu0 0
  %773 = vmatprep.subr.bf16.mxu0 0
  %774 = vmatpush1.bf16.xpose.msra.mxu0 0
  %775 = vmatprep.subr.bf16.mxu0 0
  %776 = vmatpush1.bf16.xpose.msra.mxu0 0
  %777 = vmatprep.subr.bf16.mxu0 0
  %778 = vmatpush1.bf16.xpose.msra.mxu0 0
  %779 = vmatprep.subr.bf16.mxu0 0
  %780 = vmatpush1.bf16.xpose.msra.mxu0 0
  %781 = vmatprep.subr.bf16.mxu0 0
  %782 = vmatpush1.bf16.xpose.msra.mxu0 0
  %783 = vmatprep.subr.bf16.mxu0 0
  %784 = vmatpush1.bf16.xpose.msra.mxu0 0
  %785 = vmatprep.subr.bf16.mxu0 0
  %786 = vmatpush1.bf16.xpose.msra.mxu0 0
  %787 = vmatprep.subr.bf16.mxu0 0
  %788 = vmatpush1.bf16.xpose.msra.mxu0 0
  %789 = vmatprep.subr.bf16.mxu0 0
  %790 = vmatpush1.bf16.xpose.msra.mxu0 0
  %791 = vmatprep.mubr.bf16.mxu0 0
  %792 = vmatmul.mubr.bf16.gmra.mrb[0].mxu0 %v754
  %v793 = vpop.f32.mrb[0].mxu0
  %v794 = vadd.f32 0.0, %v793
  %v795 = vpop.f32.mrb[0].mxu0
  %v796 = vpop.f32.mrb[0].mxu0
  %v797 = vpop.f32.mrb[0].mxu0
  %798 = vdwg.mxu0
  %v799 = vmul.f32 %v794, 0.17677669
  %v800 = vadd.f32 %v799, %v166
  %v801 = vsel %vm171, %v800, -inf
  %802 = vmax.xlane.f32.xlu0 %v801
  %v803 = vpop.xlane.xlu0 %802
  %v804 = vsub.f32 %v800, %v803
  %v805 = vmul.f32 %v804, 1.442695
  %v806 = vpow.pop %v805
  %v807 = vsel %vm171, %v806, 0.0
  %808 = vadd.xlane.f32.xlu0 %v807
  %v809 = vpop.xlane.xlu0 %808
  %v810 = vrcp.pop %v809
  %v811 = vmul.f32 %v806, %v810
  %v812 = vpack.c.bf16 %v811, %v811
  %813 = vrot.lane.b32.xlu0 %v636, 56
  %v814 = vpop.permute.xlu0 %813
  %v816 = vsel %vm171, %v812, 0
  %v819 = vsel %vm237, %v814, 0
  %821 = vmatprep.subr.bf16.mxu0 0
  %822 = vmatpush1.bf16.msra.mxu0 %v819
  %823 = vmatprep.subr.bf16.mxu0 0
  %824 = vmatpush1.bf16.msra.mxu0 0
  %825 = vmatprep.subr.bf16.mxu0 0
  %826 = vmatpush1.bf16.msra.mxu0 0
  %827 = vmatprep.subr.bf16.mxu0 0
  %828 = vmatpush1.bf16.msra.mxu0 0
  %829 = vmatprep.subr.bf16.mxu0 0
  %830 = vmatpush1.bf16.msra.mxu0 0
  %831 = vmatprep.subr.bf16.mxu0 0
  %832 = vmatpush1.bf16.msra.mxu0 0
  %833 = vmatprep.subr.bf16.mxu0 0
  %834 = vmatpush1.bf16.msra.mxu0 0
  %835 = vmatprep.subr.bf16.mxu0 0
  %836 = vmatpush1.bf16.msra.mxu0 0
  %837 = vmatprep.subr.bf16.mxu0 0
  %838 = vmatpush1.bf16.msra.mxu0 0
  %839 = vmatprep.subr.bf16.mxu0 0
  %840 = vmatpush1.bf16.msra.mxu0 0
  %841 = vmatprep.subr.bf16.mxu0 0
  %842 = vmatpush1.bf16.msra.mxu0 0
  %843 = vmatprep.subr.bf16.mxu0 0
  %844 = vmatpush1.bf16.msra.mxu0 0
  %845 = vmatprep.subr.bf16.mxu0 0
  %846 = vmatpush1.bf16.msra.mxu0 0
  %847 = vmatprep.subr.bf16.mxu0 0
  %848 = vmatpush1.bf16.msra.mxu0 0
  %849 = vmatprep.subr.bf16.mxu0 0
  %850 = vmatpush1.bf16.msra.mxu0 0
  %851 = vmatprep.subr.bf16.mxu0 0
  %852 = vmatpush1.bf16.msra.mxu0 0
  %853 = vmatprep.mubr.bf16.mxu0 0
  %854 = vmatmul.mubr.bf16.gmra.mrb[0].mxu0 %v816
  %v855 = vpop.f32.mrb[0].mxu0
  %v856 = vadd.f32 0.0, %v855
  %v857 = vpop.f32.mrb[0].mxu0
  %v858 = vpop.f32.mrb[0].mxu0
  %v859 = vpop.f32.mrb[0].mxu0
  %860 = vdwg.mxu0
  %862 = vrot.lane.b32.xlu0 %v856, 8
  %v863 = vpop.permute.xlu0 %862
  %865 = vst.msk [vmem:[#allocation2 + $0x8] sm:$0xff] %vm398, %v863
  %866 = vrot.lane.b32.xlu0 %v636, 112
  %v867 = vpop.permute.xlu0 %866
  %868 = vrot.lane.b32.xlu0 %v636, 80
  %v869 = vpop.permute.xlu0 %868
  %v871 = vsel %vm171, %v867, 0
  %v874 = vsel %vm171, %v869, 0
  %876 = vmatprep.subr.bf16.mxu0 0
  %877 = vmatpush1.bf16.xpose.msra.mxu0 %v874
  %878 = vmatprep.subr.bf16.mxu0 0
  %879 = vmatpush1.bf16.xpose.msra.mxu0 0
  %880 = vmatprep.subr.bf16.mxu0 0
  %881 = vmatpush1.bf16.xpose.msra.mxu0 0
  %882 = vmatprep.subr.bf16.mxu0 0
  %883 = vmatpush1.bf16.xpose.msra.mxu0 0
  %884 = vmatprep.subr.bf16.mxu0 0
  %885 = vmatpush1.bf16.xpose.msra.mxu0 0
  %886 = vmatprep.subr.bf16.mxu0 0
  %887 = vmatpush1.bf16.xpose.msra.mxu0 0
  %888 = vmatprep.subr.bf16.mxu0 0
  %889 = vmatpush1.bf16.xpose.msra.mxu0 0
  %890 = vmatprep.subr.bf16.mxu0 0
  %891 = vmatpush1.bf16.xpose.msra.mxu0 0
  %892 = vmatprep.subr.bf16.mxu0 0
  %893 = vmatpush1.bf16.xpose.msra.mxu0 0
  %894 = vmatprep.subr.bf16.mxu0 0
  %895 = vmatpush1.bf16.xpose.msra.mxu0 0
  %896 = vmatprep.subr.bf16.mxu0 0
  %897 = vmatpush1.bf16.xpose.msra.mxu0 0
  %898 = vmatprep.subr.bf16.mxu0 0
  %899 = vmatpush1.bf16.xpose.msra.mxu0 0
  %900 = vmatprep.subr.bf16.mxu0 0
  %901 = vmatpush1.bf16.xpose.msra.mxu0 0
  %902 = vmatprep.subr.bf16.mxu0 0
  %903 = vmatpush1.bf16.xpose.msra.mxu0 0
  %904 = vmatprep.subr.bf16.mxu0 0
  %905 = vmatpush1.bf16.xpose.msra.mxu0 0
  %906 = vmatprep.subr.bf16.mxu0 0
  %907 = vmatpush1.bf16.xpose.msra.mxu0 0
  %908 = vmatprep.mubr.bf16.mxu0 0
  %909 = vmatmul.mubr.bf16.gmra.mrb[0].mxu0 %v871
  %v910 = vpop.f32.mrb[0].mxu0
  %v911 = vadd.f32 0.0, %v910
  %v912 = vpop.f32.mrb[0].mxu0
  %v913 = vpop.f32.mrb[0].mxu0
  %v914 = vpop.f32.mrb[0].mxu0
  %915 = vdwg.mxu0
  %v916 = vmul.f32 %v911, 0.17677669
  %v917 = vadd.f32 %v916, %v166
  %v918 = vsel %vm171, %v917, -inf
  %919 = vmax.xlane.f32.xlu0 %v918
  %v920 = vpop.xlane.xlu0 %919
  %v921 = vsub.f32 %v917, %v920
  %v922 = vmul.f32 %v921, 1.442695
  %v923 = vpow.pop %v922
  %v924 = vsel %vm171, %v923, 0.0
  %925 = vadd.xlane.f32.xlu0 %v924
  %v926 = vpop.xlane.xlu0 %925
  %v927 = vrcp.pop %v926
  %v928 = vmul.f32 %v923, %v927
  %v929 = vpack.c.bf16 %v928, %v928
  %930 = vrot.lane.b32.xlu0 %v636, 48
  %v931 = vpop.permute.xlu0 %930
  %v933 = vsel %vm171, %v929, 0
  %v936 = vsel %vm237, %v931, 0
  %938 = vmatprep.subr.bf16.mxu0 0
  %939 = vmatpush1.bf16.msra.mxu0 %v936
  %940 = vmatprep.subr.bf16.mxu0 0
  %941 = vmatpush1.bf16.msra.mxu0 0
  %942 = vmatprep.subr.bf16.mxu0 0
  %943 = vmatpush1.bf16.msra.mxu0 0
  %944 = vmatprep.subr.bf16.mxu0 0
  %945 = vmatpush1.bf16.msra.mxu0 0
  %946 = vmatprep.subr.bf16.mxu0 0
  %947 = vmatpush1.bf16.msra.mxu0 0
  %948 = vmatprep.subr.bf16.mxu0 0
  %949 = vmatpush1.bf16.msra.mxu0 0
  %950 = vmatprep.subr.bf16.mxu0 0
  %951 = vmatpush1.bf16.msra.mxu0 0
  %952 = vmatprep.subr.bf16.mxu0 0
  %953 = vmatpush1.bf16.msra.mxu0 0
  %954 = vmatprep.subr.bf16.mxu0 0
  %955 = vmatpush1.bf16.msra.mxu0 0
  %956 = vmatprep.subr.bf16.mxu0 0
  %957 = vmatpush1.bf16.msra.mxu0 0
  %958 = vmatprep.subr.bf16.mxu0 0
  %959 = vmatpush1.bf16.msra.mxu0 0
  %960 = vmatprep.subr.bf16.mxu0 0
  %961 = vmatpush1.bf16.msra.mxu0 0
  %962 = vmatprep.subr.bf16.mxu0 0
  %963 = vmatpush1.bf16.msra.mxu0 0
  %964 = vmatprep.subr.bf16.mxu0 0
  %965 = vmatpush1.bf16.msra.mxu0 0
  %966 = vmatprep.subr.bf16.mxu0 0
  %967 = vmatpush1.bf16.msra.mxu0 0
  %968 = vmatprep.subr.bf16.mxu0 0
  %969 = vmatpush1.bf16.msra.mxu0 0
  %970 = vmatprep.mubr.bf16.mxu0 0
  %971 = vmatmul.mubr.bf16.gmra.mrb[0].mxu0 %v933
  %v972 = vpop.f32.mrb[0].mxu0
  %v973 = vadd.f32 0.0, %v972
  %v974 = vpop.f32.mrb[0].mxu0
  %v975 = vpop.f32.mrb[0].mxu0
  %v976 = vpop.f32.mrb[0].mxu0
  %977 = vdwg.mxu0
  %979 = vrot.lane.b32.xlu0 %v973, 16
  %v980 = vpop.permute.xlu0 %979
  %982 = vst.msk [vmem:[#allocation2 + $0x8] sm:$0xff] %vm516, %v980
  %983 = vrot.lane.b32.xlu0 %v636, 104
  %v984 = vpop.permute.xlu0 %983
  %985 = vrot.lane.b32.xlu0 %v636, 72
  %v986 = vpop.permute.xlu0 %985
  %v988 = vsel %vm171, %v984, 0
  %v991 = vsel %vm171, %v986, 0
  %993 = vmatprep.subr.bf16.mxu0 0
  %994 = vmatpush1.bf16.xpose.msra.mxu0 %v991
  %995 = vmatprep.subr.bf16.mxu0 0
  %996 = vmatpush1.bf16.xpose.msra.mxu0 0
  %997 = vmatprep.subr.bf16.mxu0 0
  %998 = vmatpush1.bf16.xpose.msra.mxu0 0
  %999 = vmatprep.subr.bf16.mxu0 0
  %1000 = vmatpush1.bf16.xpose.msra.mxu0 0
  %1001 = vmatprep.subr.bf16.mxu0 0
  %1002 = vmatpush1.bf16.xpose.msra.mxu0 0
  %1003 = vmatprep.subr.bf16.mxu0 0
  %1004 = vmatpush1.bf16.xpose.msra.mxu0 0
  %1005 = vmatprep.subr.bf16.mxu0 0
  %1006 = vmatpush1.bf16.xpose.msra.mxu0 0
  %1007 = vmatprep.subr.bf16.mxu0 0
  %1008 = vmatpush1.bf16.xpose.msra.mxu0 0
  %1009 = vmatprep.subr.bf16.mxu0 0
  %1010 = vmatpush1.bf16.xpose.msra.mxu0 0
  %1011 = vmatprep.subr.bf16.mxu0 0
  %1012 = vmatpush1.bf16.xpose.msra.mxu0 0
  %1013 = vmatprep.subr.bf16.mxu0 0
  %1014 = vmatpush1.bf16.xpose.msra.mxu0 0
  %1015 = vmatprep.subr.bf16.mxu0 0
  %1016 = vmatpush1.bf16.xpose.msra.mxu0 0
  %1017 = vmatprep.subr.bf16.mxu0 0
  %1018 = vmatpush1.bf16.xpose.msra.mxu0 0
  %1019 = vmatprep.subr.bf16.mxu0 0
  %1020 = vmatpush1.bf16.xpose.msra.mxu0 0
  %1021 = vmatprep.subr.bf16.mxu0 0
  %1022 = vmatpush1.bf16.xpose.msra.mxu0 0
  %1023 = vmatprep.subr.bf16.mxu0 0
  %1024 = vmatpush1.bf16.xpose.msra.mxu0 0
  %1025 = vmatprep.mubr.bf16.mxu0 0
  %1026 = vmatmul.mubr.bf16.gmra.mrb[0].mxu0 %v988
  %v1027 = vpop.f32.mrb[0].mxu0
  %v1028 = vadd.f32 0.0, %v1027
  %v1029 = vpop.f32.mrb[0].mxu0
  %v1030 = vpop.f32.mrb[0].mxu0
  %v1031 = vpop.f32.mrb[0].mxu0
  %1032 = vdwg.mxu0
  %v1033 = vmul.f32 %v1028, 0.17677669
  %v1034 = vadd.f32 %v1033, %v166
  %v1035 = vsel %vm171, %v1034, -inf
  %1036 = vmax.xlane.f32.xlu0 %v1035
  %v1037 = vpop.xlane.xlu0 %1036
  %v1038 = vsub.f32 %v1034, %v1037
  %v1039 = vmul.f32 %v1038, 1.442695
  %v1040 = vpow.pop %v1039
  %v1041 = vsel %vm171, %v1040, 0.0
  %1042 = vadd.xlane.f32.xlu0 %v1041
  %v1043 = vpop.xlane.xlu0 %1042
  %v1044 = vrcp.pop %v1043
  %v1045 = vmul.f32 %v1040, %v1044
  %v1046 = vpack.c.bf16 %v1045, %v1045
  %1047 = vrot.lane.b32.xlu0 %v636, 40
  %v1048 = vpop.permute.xlu0 %1047
  %v1050 = vsel %vm171, %v1046, 0
  %v1053 = vsel %vm237, %v1048, 0
  %1055 = vmatprep.subr.bf16.mxu0 0
  %1056 = vmatpush1.bf16.msra.mxu0 %v1053
  %1057 = vmatprep.subr.bf16.mxu0 0
  %1058 = vmatpush1.bf16.msra.mxu0 0
  %1059 = vmatprep.subr.bf16.mxu0 0
  %1060 = vmatpush1.bf16.msra.mxu0 0
  %1061 = vmatprep.subr.bf16.mxu0 0
  %1062 = vmatpush1.bf16.msra.mxu0 0
  %1063 = vmatprep.subr.bf16.mxu0 0
  %1064 = vmatpush1.bf16.msra.mxu0 0
  %1065 = vmatprep.subr.bf16.mxu0 0
  %1066 = vmatpush1.bf16.msra.mxu0 0
  %1067 = vmatprep.subr.bf16.mxu0 0
  %1068 = vmatpush1.bf16.msra.mxu0 0
  %1069 = vmatprep.subr.bf16.mxu0 0
  %1070 = vmatpush1.bf16.msra.mxu0 0
  %1071 = vmatprep.subr.bf16.mxu0 0
  %1072 = vmatpush1.bf16.msra.mxu0 0
  %1073 = vmatprep.subr.bf16.mxu0 0
  %1074 = vmatpush1.bf16.msra.mxu0 0
  %1075 = vmatprep.subr.bf16.mxu0 0
  %1076 = vmatpush1.bf16.msra.mxu0 0
  %1077 = vmatprep.subr.bf16.mxu0 0
  %1078 = vmatpush1.bf16.msra.mxu0 0
  %1079 = vmatprep.subr.bf16.mxu0 0
  %1080 = vmatpush1.bf16.msra.mxu0 0
  %1081 = vmatprep.subr.bf16.mxu0 0
  %1082 = vmatpush1.bf16.msra.mxu0 0
  %1083 = vmatprep.subr.bf16.mxu0 0
  %1084 = vmatpush1.bf16.msra.mxu0 0
  %1085 = vmatprep.subr.bf16.mxu0 0
  %1086 = vmatpush1.bf16.msra.mxu0 0
  %1087 = vmatprep.mubr.bf16.mxu0 0
  %1088 = vmatmul.mubr.bf16.gmra.mrb[0].mxu0 %v1050
  %v1089 = vpop.f32.mrb[0].mxu0
  %v1090 = vadd.f32 0.0, %v1089
  %v1091 = vpop.f32.mrb[0].mxu0
  %v1092 = vpop.f32.mrb[0].mxu0
  %v1093 = vpop.f32.mrb[0].mxu0
  %1094 = vdwg.mxu0
  %1096 = vrot.lane.b32.xlu0 %v1090, 24
  %v1097 = vpop.permute.xlu0 %1096
  %1099 = vst.msk [vmem:[#allocation2 + $0x8] sm:$0xff] %vm634, %v1097
  %v1100 = vld [vmem:[#allocation2] sm:$0xff]
  %v1101 = vld [vmem:[#allocation2 + $0x8] sm:$0xff]
  %v1102 = vld [vmem:[%s5] sm:$0xf]
  %v1103 = vld [vmem:[%s5 + $0x4] sm:$0xf]
  %v1104 = vld [vmem:[%s5 + $0x8] sm:$0xf]
  %v1105 = vld [vmem:[%s5 + $0xc] sm:$0xf]
  %v1106 = vpack.c.bf16 %v1101, %v1100
  %v1107 = vld [vmem:[%s6] sm:$0x1]
  %v1109 = vlaneseq
  %v1110 = vshrl.u32 %v1109, 7
  %v1111 = vsub.s32 0, %v1110
  %v1112 = vrot.slane %v1107, %v1111
  %v1118 = vunpack.c.l.b16 %v1102
  %v1119 = vunpack.c.l.b16 %v1103
  %v1120 = vunpack.c.l.b16 %v1104
  %v1121 = vunpack.c.l.b16 %v1105
  %v1122 = vpack.c.b16 %v1119, %v1118
  %v1123 = vpack.c.b16 %v1121, %v1120
  %v1127 = vsel %vm49, %v1106, 0
  %1129 = vmatprep.subr.bf16.mxu0 0
  %1130 = vmatpush1.bf16.msra.mxu0 %v1122
  %1131 = vmatprep.subr.bf16.mxu0 0
  %1132 = vmatpush1.bf16.msra.mxu0 %v1123
  %1133 = vmatprep.subr.bf16.mxu0 0
  %1134 = vmatpush1.bf16.msra.mxu0 0
  %1135 = vmatprep.subr.bf16.mxu0 0
  %1136 = vmatpush1.bf16.msra.mxu0 0
  %1137 = vmatprep.subr.bf16.mxu0 0
  %1138 = vmatpush1.bf16.msra.mxu0 0
  %1139 = vmatprep.subr.bf16.mxu0 0
  %1140 = vmatpush1.bf16.msra.mxu0 0
  %1141 = vmatprep.subr.bf16.mxu0 0
  %1142 = vmatpush1.bf16.msra.mxu0 0
  %1143 = vmatprep.subr.bf16.mxu0 0
  %1144 = vmatpush1.bf16.msra.mxu0 0
  %1145 = vmatprep.subr.bf16.mxu0 0
  %1146 = vmatpush1.bf16.msra.mxu0 0
  %1147 = vmatprep.subr.bf16.mxu0 0
  %1148 = vmatpush1.bf16.msra.mxu0 0
  %1149 = vmatprep.subr.bf16.mxu0 0
  %1150 = vmatpush1.bf16.msra.mxu0 0
  %1151 = vmatprep.subr.bf16.mxu0 0
  %1152 = vmatpush1.bf16.msra.mxu0 0
  %1153 = vmatprep.subr.bf16.mxu0 0
  %1154 = vmatpush1.bf16.msra.mxu0 0
  %1155 = vmatprep.subr.bf16.mxu0 0
  %1156 = vmatpush1.bf16.msra.mxu0 0
  %1157 = vmatprep.subr.bf16.mxu0 0
  %1158 = vmatpush1.bf16.msra.mxu0 0
  %1159 = vmatprep.subr.bf16.mxu0 0
  %1160 = vmatpush1.bf16.msra.mxu0 0
  %1161 = vmatprep.mubr.bf16.mxu0 0
  %1162 = vmatmul.mubr.bf16.gmra.mrb[0].mxu0 %v1127
  %v1163 = vpop.f32.mrb[0].mxu0
  %v1164 = vadd.f32 %v1112, %v1163
  %v1165 = vpop.f32.mrb[0].mxu0
  %v1166 = vpop.f32.mrb[0].mxu0
  %v1167 = vadd.f32 %v1112, %v1166
  %v1168 = vpop.f32.mrb[0].mxu0
  %1169 = vdwg.mxu0
  %v1170 = vadd.f32 %v91, %v1164
  %v1171 = vadd.f32 %v92, %v1167
  %v1172 = vld [vmem:[%s7] sm:$0x1]
  %v1173 = vld [vmem:[%s8] sm:$0x1]
  %v1174 = vsel %vm49, %v1170, 0.0
  %1175 = vadd.xlane.f32.xlu0 %v1174
  %v1176 = vpop.xlane.xlu0 %1175
  %v1177 = vsel %vm49, %v1171, 0.0
  %1178 = vadd.xlane.f32.xlu0 %v1177
  %v1179 = vpop.xlane.xlu0 %1178
  %v1180 = vmul.f32 %v1176, %v56
  %v1181 = vmul.f32 %v1179, %v56
  %v1182 = vsub.f32 %v1170, %v1180
  %v1183 = vsub.f32 %v1171, %v1181
  %v1184 = vmul.f32 %v1182, %v1182
  %v1185 = vmul.f32 %v1183, %v1183
  %v1186 = vsel %vm49, %v1184, 0.0
  %1187 = vadd.xlane.f32.xlu0 %v1186
  %v1188 = vpop.xlane.xlu0 %1187
  %v1189 = vsel %vm49, %v1185, 0.0
  %1190 = vadd.xlane.f32.xlu0 %v1189
  %v1191 = vpop.xlane.xlu0 %1190
  %v1192 = vmul.f32 %v1188, %v56
  %v1193 = vmul.f32 %v1191, %v56
  %v1194 = vadd.f32 %v1192, 1e-05
  %v1195 = vadd.f32 %v1193, 1e-05
  %v1196 = vrsqrt.pop %v1194
  %v1197 = vrsqrt.pop %v1195
  %v1198 = vmul.f32 %v1182, %v1196
  %v1199 = vmul.f32 %v1183, %v1197
  %v1201 = vlaneseq
  %v1202 = vshrl.u32 %v1201, 7
  %v1203 = vsub.s32 0, %v1202
  %v1204 = vrot.slane %v1172, %v1203
  %v1206 = vmul.f32 %v1198, %v1204
  %v1207 = vmul.f32 %v1199, %v1204
  %v1209 = vlaneseq
  %v1210 = vshrl.u32 %v1209, 7
  %v1211 = vsub.s32 0, %v1210
  %v1212 = vrot.slane %v1173, %v1211
  %v1214 = vadd.f32 %v1206, %v1212
  %v1215 = vadd.f32 %v1207, %v1212
  %v1216 = vld [vmem:[%s9] sm:$0xf]
  %v1217 = vld [vmem:[%s9 + $0x4] sm:$0xf]
  %v1218 = vld [vmem:[%s9 + $0x8] sm:$0xf]
  %v1219 = vld [vmem:[%s9 + $0xc] sm:$0xf]
  %v1220 = vpack.c.bf16 %v1215, %v1214
  %v1221 = vld [vmem:[%s10] sm:$0x1]
  %v1223 = vlaneseq
  %v1224 = vshrl.u32 %v1223, 7
  %v1225 = vsub.s32 0, %v1224
  %v1226 = vrot.slane %v1221, %v1225
  %v1232 = vunpack.c.l.b16 %v1216
  %v1233 = vunpack.c.l.b16 %v1217
  %v1234 = vunpack.c.l.b16 %v1218
  %v1235 = vunpack.c.l.b16 %v1219
  %v1236 = vpack.c.b16 %v1233, %v1232
  %v1237 = vpack.c.b16 %v1235, %v1234
  %v1241 = vsel %vm49, %v1220, 0
  %1243 = vmatprep.subr.bf16.mxu0 0
  %1244 = vmatpush1.bf16.msra.mxu0 %v1236
  %1245 = vmatprep.subr.bf16.mxu0 0
  %1246 = vmatpush1.bf16.msra.mxu0 %v1237
  %1247 = vmatprep.subr.bf16.mxu0 0
  %1248 = vmatpush1.bf16.msra.mxu0 0
  %1249 = vmatprep.subr.bf16.mxu0 0
  %1250 = vmatpush1.bf16.msra.mxu0 0
  %1251 = vmatprep.subr.bf16.mxu0 0
  %1252 = vmatpush1.bf16.msra.mxu0 0
  %1253 = vmatprep.subr.bf16.mxu0 0
  %1254 = vmatpush1.bf16.msra.mxu0 0
  %1255 = vmatprep.subr.bf16.mxu0 0
  %1256 = vmatpush1.bf16.msra.mxu0 0
  %1257 = vmatprep.subr.bf16.mxu0 0
  %1258 = vmatpush1.bf16.msra.mxu0 0
  %1259 = vmatprep.subr.bf16.mxu0 0
  %1260 = vmatpush1.bf16.msra.mxu0 0
  %1261 = vmatprep.subr.bf16.mxu0 0
  %1262 = vmatpush1.bf16.msra.mxu0 0
  %1263 = vmatprep.subr.bf16.mxu0 0
  %1264 = vmatpush1.bf16.msra.mxu0 0
  %1265 = vmatprep.subr.bf16.mxu0 0
  %1266 = vmatpush1.bf16.msra.mxu0 0
  %1267 = vmatprep.subr.bf16.mxu0 0
  %1268 = vmatpush1.bf16.msra.mxu0 0
  %1269 = vmatprep.subr.bf16.mxu0 0
  %1270 = vmatpush1.bf16.msra.mxu0 0
  %1271 = vmatprep.subr.bf16.mxu0 0
  %1272 = vmatpush1.bf16.msra.mxu0 0
  %1273 = vmatprep.subr.bf16.mxu0 0
  %1274 = vmatpush1.bf16.msra.mxu0 0
  %1275 = vmatprep.mubr.bf16.mxu0 0
  %1276 = vmatmul.mubr.bf16.gmra.mrb[0].mxu0 %v1241
  %v1277 = vpop.f32.mrb[0].mxu0
  %v1278 = vadd.f32 %v1226, %v1277
  %v1279 = vpop.f32.mrb[0].mxu0
  %v1280 = vpop.f32.mrb[0].mxu0
  %v1281 = vadd.f32 %v1226, %v1280
  %v1282 = vpop.f32.mrb[0].mxu0
  %1283 = vdwg.mxu0
  %v1284 = vmax.f32 %v1278, 0.0
  %v1285 = vmax.f32 %v1281, 0.0
  %v1286 = vld [vmem:[%s11] sm:$0xf]
  %v1287 = vld [vmem:[%s11 + $0x4] sm:$0xf]
  %v1288 = vld [vmem:[%s11 + $0x8] sm:$0xf]
  %v1289 = vld [vmem:[%s11 + $0xc] sm:$0xf]
  %v1290 = vld [vmem:[%s11 + $0x10] sm:$0xf]
  %v1291 = vld [vmem:[%s11 + $0x14] sm:$0xf]
  %v1292 = vld [vmem:[%s11 + $0x18] sm:$0xf]
  %v1293 = vld [vmem:[%s11 + $0x1c] sm:$0xf]
  %v1294 = vpack.c.bf16 %v1285, %v1284
  %v1295 = vld [vmem:[%s12] sm:$0x1]
  %v1297 = vlaneseq
  %v1298 = vshrl.u32 %v1297, 7
  %v1299 = vsub.s32 0, %v1298
  %v1300 = vrot.slane %v1295, %v1299
  %v1310 = vunpack.c.l.b16 %v1286
  %v1311 = vunpack.c.l.b16 %v1287
  %v1312 = vunpack.c.l.b16 %v1288
  %v1313 = vunpack.c.l.b16 %v1289
  %v1314 = vunpack.c.l.b16 %v1290
  %v1315 = vunpack.c.l.b16 %v1291
  %v1316 = vunpack.c.l.b16 %v1292
  %v1317 = vunpack.c.l.b16 %v1293
  %v1318 = vpack.c.b16 %v1311, %v1310
  %v1319 = vpack.c.b16 %v1313, %v1312
  %v1320 = vpack.c.b16 %v1315, %v1314
  %v1321 = vpack.c.b16 %v1317, %v1316
  %vm1326 = vcmask 523264
  %v1328 = vsel %vm1326, %v1294, 0
  %1330 = vmatprep.subr.bf16.mxu0 0
  %1331 = vmatpush1.bf16.msra.mxu0 %v1318
  %1332 = vmatprep.subr.bf16.mxu0 0
  %1333 = vmatpush1.bf16.msra.mxu0 %v1319
  %1334 = vmatprep.subr.bf16.mxu0 0
  %1335 = vmatpush1.bf16.msra.mxu0 %v1320
  %1336 = vmatprep.subr.bf16.mxu0 0
  %1337 = vmatpush1.bf16.msra.mxu0 %v1321
  %1338 = vmatprep.subr.bf16.mxu0 0
  %1339 = vmatpush1.bf16.msra.mxu0 0
  %1340 = vmatprep.subr.bf16.mxu0 0
  %1341 = vmatpush1.bf16.msra.mxu0 0
  %1342 = vmatprep.subr.bf16.mxu0 0
  %1343 = vmatpush1.bf16.msra.mxu0 0
  %1344 = vmatprep.subr.bf16.mxu0 0
  %1345 = vmatpush1.bf16.msra.mxu0 0
  %1346 = vmatprep.subr.bf16.mxu0 0
  %1347 = vmatpush1.bf16.msra.mxu0 0
  %1348 = vmatprep.subr.bf16.mxu0 0
  %1349 = vmatpush1.bf16.msra.mxu0 0
  %1350 = vmatprep.subr.bf16.mxu0 0
  %1351 = vmatpush1.bf16.msra.mxu0 0
  %1352 = vmatprep.subr.bf16.mxu0 0
  %1353 = vmatpush1.bf16.msra.mxu0 0
  %1354 = vmatprep.subr.bf16.mxu0 0
  %1355 = vmatpush1.bf16.msra.mxu0 0
  %1356 = vmatprep.subr.bf16.mxu0 0
  %1357 = vmatpush1.bf16.msra.mxu0 0
  %1358 = vmatprep.subr.bf16.mxu0 0
  %1359 = vmatpush1.bf16.msra.mxu0 0
  %1360 = vmatprep.subr.bf16.mxu0 0
  %1361 = vmatpush1.bf16.msra.mxu0 0
  %1362 = vmatprep.mubr.bf16.mxu0 0
  %1363 = vmatmul.mubr.bf16.gmra.mrb[0].mxu0 %v1328
  %v1364 = vpop.f32.mrb[0].mxu0
  %v1365 = vadd.f32 %v1300, %v1364
  %v1366 = vpop.f32.mrb[0].mxu0
  %v1367 = vpop.f32.mrb[0].mxu0
  %v1368 = vadd.f32 %v1300, %v1367
  %v1369 = vpop.f32.mrb[0].mxu0
  %1370 = vdwg.mxu0
  %v1371 = vmax.f32 %v1365, 0.0
  %v1372 = vmax.f32 %v1368, 0.0
  %v1373 = vadd.f32 %v1170, %v1371
  %v1374 = vadd.f32 %v1171, %v1372
  %1375 = vst.msk [vmem:[%s13] sm:$0xff] %vm49, %v1373
  %1376 = vst.msk [vmem:[%s13 + $0x8] sm:$0xff] %vm49, %v1374
  // Predicated region
  $region54: #{attention_model_forward.3} parent=0 // pred_check
    _
  $region55: #{attention_model_forward.3} parent=0 // pred_check_branch
    %1378 = sbr.rel (0) target = $region57
  $region56: #{attention_model_forward.3} parent=0 // pred_region
    _
  $region57: #{attention_model_forward.3} parent=0 // pred_fallthru
    _
  // Predicated region
  $region58: #{attention_model_forward.3} parent=0 // pred_check
    _
  $region59: #{attention_model_forward.3} parent=0 // pred_check_branch
    %1380 = sbr.rel (0) target = $region61
  $region60: #{attention_model_forward.3} parent=0 // pred_region
    _
  $region61: #{attention_model_forward.3} parent=0 // pred_fallthru
    _

</llo_original>
